<compile_context>
chip_gen: v7x
topology: tpu7x:2x2x1
jax: 0.10.0
libtpu: 0.0.40
codegen_flags: <defaults>
</compile_context>

<pallas_src>
import numpy as np
import jax
import jax.numpy as jnp
from jax import lax
from jax.experimental import pallas as pl
from jax.experimental.pallas import tpu as pltpu


def _make_kernel(H, W, Ca, Co, N):
    f32 = jnp.float32
    taps = [(sy, sx) for sy in (-1, 0, 1) for sx in (-1, 0, 1)]

    def kernel(z_ref, w3_ref, b3_ref, w1_ref, b1_ref, wz_ref, bz_ref,
               scale_ref, tmask_ref, bmask_ref, ldj_ref,
               zb_out_ref, ldj_out_ref, pa_ref, ph_ref):
        z_a = z_ref[0]                              # (Ca, N)
        z_b = z_ref[1]                              # (Ca, N)

        def fill_patches(dst_ref, x, cin, pad_val):
            # Build the (9*cin, N) im2col buffer for a 3x3 conv with the given
            # padding value, using lane rolls + precomputed border masks.
            for t, (sy, sx) in enumerate(taps):
                s = sy * W + sx                     # flattened spatial shift
                r = x if s == 0 else pltpu.roll(x, (-s) % N, axis=1)
                m = tmask_ref[t:t + 1, :]           # (1, N) validity mask
                if pad_val == 0.0:
                    if s != 0:                      # center tap mask is all-1s
                        r = r * m
                else:
                    r = r * m + (1.0 - m) * pad_val
                dst_ref[t * cin:(t + 1) * cin, :] = r

        # ---- conv0: 3x3, zero padding, Ca -> Co (single im2col matmul) -----
        fill_patches(pa_ref, z_a, Ca, 0.0)
        h = jnp.dot(w3_ref[...], pa_ref[...], preferred_element_type=f32)
        h = jnp.maximum(h + b3_ref[...], 0.0)       # (Co, N)

        # ---- conv1: 1x1, Co -> Co -------------------------------------------
        h = jnp.dot(w1_ref[...], h, preferred_element_type=f32)
        h = jnp.maximum(h + b1_ref[...], 0.0)       # (Co, N)

        # ---- ZeroConvLayer: pad value 1, 3x3 valid conv, Co -> C ------------
        fill_patches(ph_ref, h, Co, 1.0)
        out = jnp.dot(wz_ref[...], ph_ref[...], preferred_element_type=f32)
        out = (out + bz_ref[...]) * jnp.exp(scale_ref[...] * 3.0)   # (C, N)

        # ---- affine coupling transform (reverse=False) ----------------------
        th_s = jax.nn.sigmoid(out[:Ca, :] + 2.0)    # (Ca, N)
        th_t = out[Ca:, :]                          # (Ca, N)
        zb_out_ref[...] = z_b * th_s + th_t         # only z_b half is written

        # ---- log-det-Jacobian: per-batch sum of log(th_s) --------------------
        logs = jnp.sum(jnp.log(th_s), axis=0, keepdims=True)            # (1, N)
        per_b = jnp.sum(bmask_ref[...] * logs, axis=1, keepdims=True)   # (B, 1)
        ldj_out_ref[...] = ldj_ref[...] + per_b

    return kernel


@jax.jit
def affine_coupling_forward(z_nchw, ldj, params):
    """Pallas forward of AffineCouplingLayer (reverse=False).

    z_nchw: (B, C, H, W) float32  (PyTorch NCHW)
    ldj:    (B,)          float32
    params: (w3, b3, w1, b1, wz, bz, scale) in PyTorch layouts (conv OIHW).
    Returns (z_out (B,C,H,W), ldj_out (B,)).
    """
    w3, b3, w1, b1, wz, bz, scale = params
    B, C, H, W = z_nchw.shape
    Ca = C // 2
    Co = w3.shape[0]
    N = B * H * W
    f32 = jnp.float32

    # --- layout glue: NCHW -> (2, Ca, B*H*W); OIHW -> im2col matrices --------
    z_k = jnp.transpose(z_nchw.astype(f32), (1, 0, 2, 3)).reshape(2, Ca, N)
    w3_k = jnp.transpose(w3.astype(f32), (0, 2, 3, 1)).reshape(Co, 9 * Ca)
    wz_k = jnp.transpose(wz.astype(f32), (0, 2, 3, 1)).reshape(C, 9 * Co)
    w1_k = w1[:, :, 0, 0].astype(f32)               # (Co_out, Co_in)
    b3_k = b3.reshape(Co, 1).astype(f32)
    b1_k = b1.reshape(Co, 1).astype(f32)
    bz_k = bz.reshape(C, 1).astype(f32)
    scale_k = scale.reshape(C, 1).astype(f32)
    ldj_k = ldj.reshape(B, 1).astype(f32)

    # 3x3-tap border-validity masks and per-batch lane indicator (host consts).
    yy = np.arange(H)[:, None]
    xx = np.arange(W)[None, :]
    tap_masks = []
    for sy in (-1, 0, 1):
        for sx in (-1, 0, 1):
            valid = ((yy + sy >= 0) & (yy + sy < H) &
                     (xx + sx >= 0) & (xx + sx < W))
            tap_masks.append(valid.reshape(H * W))
    tmask = jnp.asarray(np.tile(np.stack(tap_masks), (1, B)), dtype=f32)     # (9, N)
    bmask = jnp.asarray(np.kron(np.eye(B), np.ones((1, H * W))), dtype=f32)  # (B, N)

    kernel = _make_kernel(H, W, Ca, Co, N)

    def _full(a):
        return pl.BlockSpec(a.shape, lambda i, _nd=a.ndim: (0,) * _nd)

    z_in_spec = pl.BlockSpec((2, Ca, N), lambda i: (0, 0, 0))
    zb_out_spec = pl.BlockSpec((None, Ca, N), lambda i: (1, 0, 0))  # z_b half only
    ldj_spec = pl.BlockSpec((B, 1), lambda i: (0, 0))

    z_out, ldj_out = pl.pallas_call(
        kernel,
        grid=(1,),
        in_specs=[z_in_spec, _full(w3_k), _full(b3_k), _full(w1_k),
                  _full(b1_k), _full(wz_k), _full(bz_k), _full(scale_k),
                  _full(tmask), _full(bmask), ldj_spec],
        out_specs=(zb_out_spec, ldj_spec),
        out_shape=(jax.ShapeDtypeStruct((2, Ca, N), f32),
                   jax.ShapeDtypeStruct((B, 1), f32)),
        scratch_shapes=[pltpu.VMEM((9 * Ca, N), f32),   # im2col for conv0
                        pltpu.VMEM((9 * Co, N), f32)],  # im2col for ZeroConv
        input_output_aliases={0: 0},                    # z_a preserved in place
        compiler_params=pltpu.CompilerParams(
            dimension_semantics=("arbitrary",)),
    )(z_k, w3_k, b3_k, w1_k, b1_k, wz_k, bz_k, scale_k, tmask, bmask, ldj_k)

    z_out_nchw = jnp.transpose(z_out.reshape(C, B, H, W), (1, 0, 2, 3))
    return z_out_nchw, ldj_out.reshape(B)


def _reference_forward(z, ldj, params):
    """Pure-JAX (lax.conv) reference of the PyTorch forward, NCHW."""
    w3, b3, w1, b1, wz, bz, scale = params
    Ca = z.shape[1] // 2
    z_a, z_b = z[:, :Ca], z[:, Ca:]
    dn = ('NCHW', 'OIHW', 'NCHW')
    h = lax.conv_general_dilated(z_a, w3, (1, 1), [(1, 1), (1, 1)],
                                 dimension_numbers=dn)
    h = jnp.maximum(h + b3[None, :, None, None], 0.0)
    h = lax.conv_general_dilated(h, w1, (1, 1), [(0, 0), (0, 0)],
                                 dimension_numbers=dn)
    h = jnp.maximum(h + b1[None, :, None, None], 0.0)
    hp = jnp.pad(h, ((0, 0), (0, 0), (1, 1), (1, 1)), constant_values=1.0)
    out = lax.conv_general_dilated(hp, wz, (1, 1), [(0, 0), (0, 0)],
                                   dimension_numbers=dn)
    out = (out + bz[None, :, None, None]) * jnp.exp(scale * 3.0)
    th_s = jax.nn.sigmoid(out[:, :Ca] + 2.0)
    th_t = out[:, Ca:]
    zb_new = z_b * th_s + th_t
    ldj_new = ldj + jnp.sum(jnp.log(th_s), axis=(1, 2, 3))
    return jnp.concatenate([z_a, zb_new], axis=1), ldj_new


if __name__ == "__main__":
    B, C, H, W = 2, 4, 16, 16      # c_in = 4
    C_hidden = 8                   # c_out of the coupling network
    Ca = C // 2

    key = jax.random.PRNGKey(0)
    kz, kl, k1, k2, k3, k4, k5 = jax.random.split(key, 7)

    z = jax.random.normal(kz, (B, C, H, W), dtype=jnp.float32)
    ldj = jax.random.normal(kl, (B,), dtype=jnp.float32)

    # Deterministic parameter init (PyTorch layouts: conv weights OIHW).
    w3 = 0.05 * jax.random.normal(k1, (C_hidden, Ca, 3, 3), dtype=jnp.float32)
    b3 = jnp.zeros((C_hidden,), jnp.float32)
    w1 = 0.05 * jax.random.normal(k2, (C_hidden, C_hidden, 1, 1), dtype=jnp.float32)
    b1 = jnp.zeros((C_hidden,), jnp.float32)
    # NOTE: the PyTorch module zero-initialises ZeroConvLayer's params; small
    # deterministic random values are used here so the kernel path is exercised.
    wz = 0.05 * jax.random.normal(k3, (C, C_hidden, 3, 3), dtype=jnp.float32)
    bz = 0.05 * jax.random.normal(k4, (C,), dtype=jnp.float32)
    scale = 0.05 * jax.random.normal(k5, (1, C, 1, 1), dtype=jnp.float32)
    params = (w3, b3, w1, b1, wz, bz, scale)

    z_out, ldj_out = affine_coupling_forward(z, ldj, params)
    jax.block_until_ready((z_out, ldj_out))

    z_expect, ldj_expect = _reference_forward(z, ldj, params)
    assert z_out.shape == z.shape and ldj_out.shape == ldj.shape
    assert bool(jnp.allclose(z_out, z_expect, atol=2e-4, rtol=2e-4))
    assert bool(jnp.allclose(ldj_out, ldj_expect, atol=2e-4, rtol=2e-4))
    print("KERNEL_OK")
</pallas_src>

<mosaic_0001>
module attributes {stable_mosaic.version = 11 : i64} {
  func.func @kernel(%arg0: i32, %arg1: memref<2x2x512xf32, #tpu.memory_space<vmem>>, %arg2: memref<8x18xf32, #tpu.memory_space<vmem>>, %arg3: memref<8x1xf32, #tpu.memory_space<vmem>>, %arg4: memref<8x8xf32, #tpu.memory_space<vmem>>, %arg5: memref<8x1xf32, #tpu.memory_space<vmem>>, %arg6: memref<4x72xf32, #tpu.memory_space<vmem>>, %arg7: memref<4x1xf32, #tpu.memory_space<vmem>>, %arg8: memref<4x1xf32, #tpu.memory_space<vmem>>, %arg9: memref<9x512xf32, #tpu.memory_space<vmem>>, %arg10: memref<2x512xf32, #tpu.memory_space<vmem>>, %arg11: memref<2x1xf32, #tpu.memory_space<vmem>>, %arg12: memref<1x2x512xf32, #tpu.memory_space<vmem>>, %arg13: memref<2x1xf32, #tpu.memory_space<vmem>>, %arg14: memref<18x512xf32, #tpu.memory_space<vmem>>, %arg15: memref<72x512xf32, #tpu.memory_space<vmem>>) attributes {dimension_semantics = [#tpu.dimension_semantics<arbitrary>], iteration_bounds = array<i64: 1>, scalar_prefetch = 0 : i64, scratch_operands = 2 : i64, tpu.core_type = #tpu.core_type<tc>, window_params = [{pipeline_mode = #tpu.pipeline_mode<synchronous>, transform_indices = @transform_0, window_bounds = array<i64: 2, 2, 512>}, {pipeline_mode = #tpu.pipeline_mode<synchronous>, transform_indices = @transform_1, window_bounds = array<i64: 8, 18>}, {pipeline_mode = #tpu.pipeline_mode<synchronous>, transform_indices = @transform_2, window_bounds = array<i64: 8, 1>}, {pipeline_mode = #tpu.pipeline_mode<synchronous>, transform_indices = @transform_3, window_bounds = array<i64: 8, 8>}, {pipeline_mode = #tpu.pipeline_mode<synchronous>, transform_indices = @transform_4, window_bounds = array<i64: 8, 1>}, {pipeline_mode = #tpu.pipeline_mode<synchronous>, transform_indices = @transform_5, window_bounds = array<i64: 4, 72>}, {pipeline_mode = #tpu.pipeline_mode<synchronous>, transform_indices = @transform_6, window_bounds = array<i64: 4, 1>}, {pipeline_mode = #tpu.pipeline_mode<synchronous>, transform_indices = @transform_7, window_bounds = array<i64: 4, 1>}, {pipeline_mode = #tpu.pipeline_mode<synchronous>, transform_indices = @transform_8, window_bounds = array<i64: 9, 512>}, {pipeline_mode = #tpu.pipeline_mode<synchronous>, transform_indices = @transform_9, window_bounds = array<i64: 2, 512>}, {pipeline_mode = #tpu.pipeline_mode<synchronous>, transform_indices = @transform_10, window_bounds = array<i64: 2, 1>}, {transform_indices = @transform_11, window_bounds = array<i64: 1, 2, 512>}, {pipeline_mode = #tpu.pipeline_mode<synchronous>, transform_indices = @transform_12, window_bounds = array<i64: 2, 1>}]} {
    %c0 = arith.constant 0 : index
    %c0_0 = arith.constant 0 : index
    %c0_1 = arith.constant 0 : index
    %0 = vector.load %arg1[%c0, %c0_0, %c0_1] : memref<2x2x512xf32, #tpu.memory_space<vmem>>, vector<1x2x512xf32>
    %1 = vector.shape_cast %0 : vector<1x2x512xf32> to vector<2x512xf32>
    %c1 = arith.constant 1 : index
    %c0_2 = arith.constant 0 : index
    %c0_3 = arith.constant 0 : index
    %2 = vector.load %arg1[%c1, %c0_2, %c0_3] : memref<2x2x512xf32, #tpu.memory_space<vmem>>, vector<1x2x512xf32>
    %3 = vector.shape_cast %2 : vector<1x2x512xf32> to vector<2x512xf32>
    %c17_i32 = arith.constant 17 : i32
    %4 = tpu.dynamic_rotate %1 by %c17_i32 dim 1 : vector<2x512xf32>, i32 -> vector<2x512xf32>
    %c0_4 = arith.constant 0 : index
    %c0_5 = arith.constant 0 : index
    %5 = vector.load %arg9[%c0_4, %c0_5] : memref<9x512xf32, #tpu.memory_space<vmem>>, vector<1x512xf32>
    %6 = vector.broadcast %5 : vector<1x512xf32> to vector<2x512xf32>
    %7 = arith.mulf %4, %6 : vector<2x512xf32>
    %c0_6 = arith.constant 0 : index
    %c0_7 = arith.constant 0 : index
    %8 = vector.load %arg14[%c0_6, %c0_7] : memref<18x512xf32, #tpu.memory_space<vmem>>, vector<2x512xf32>
    tpu.vector_store %arg14[%c0_6, %c0_7], %7 {strides = array<i32>} : memref<18x512xf32, #tpu.memory_space<vmem>>, vector<2x512xf32>,
    %c16_i32 = arith.constant 16 : i32
    %9 = tpu.dynamic_rotate %1 by %c16_i32 dim 1 : vector<2x512xf32>, i32 -> vector<2x512xf32>
    %c1_8 = arith.constant 1 : index
    %c0_9 = arith.constant 0 : index
    %10 = vector.load %arg9[%c1_8, %c0_9] : memref<9x512xf32, #tpu.memory_space<vmem>>, vector<1x512xf32>
    %11 = vector.broadcast %10 : vector<1x512xf32> to vector<2x512xf32>
    %12 = arith.mulf %9, %11 : vector<2x512xf32>
    %c2 = arith.constant 2 : index
    %c0_10 = arith.constant 0 : index
    %13 = vector.load %arg14[%c2, %c0_10] : memref<18x512xf32, #tpu.memory_space<vmem>>, vector<2x512xf32>
    tpu.vector_store %arg14[%c2, %c0_10], %12 {strides = array<i32>} : memref<18x512xf32, #tpu.memory_space<vmem>>, vector<2x512xf32>,
    %c15_i32 = arith.constant 15 : i32
    %14 = tpu.dynamic_rotate %1 by %c15_i32 dim 1 : vector<2x512xf32>, i32 -> vector<2x512xf32>
    %c2_11 = arith.constant 2 : index
    %c0_12 = arith.constant 0 : index
    %15 = vector.load %arg9[%c2_11, %c0_12] : memref<9x512xf32, #tpu.memory_space<vmem>>, vector<1x512xf32>
    %16 = vector.broadcast %15 : vector<1x512xf32> to vector<2x512xf32>
    %17 = arith.mulf %14, %16 : vector<2x512xf32>
    %c4 = arith.constant 4 : index
    %c0_13 = arith.constant 0 : index
    %18 = vector.load %arg14[%c4, %c0_13] : memref<18x512xf32, #tpu.memory_space<vmem>>, vector<2x512xf32>
    tpu.vector_store %arg14[%c4, %c0_13], %17 {strides = array<i32>} : memref<18x512xf32, #tpu.memory_space<vmem>>, vector<2x512xf32>,
    %c1_i32 = arith.constant 1 : i32
    %19 = tpu.dynamic_rotate %1 by %c1_i32 dim 1 : vector<2x512xf32>, i32 -> vector<2x512xf32>
    %c3 = arith.constant 3 : index
    %c0_14 = arith.constant 0 : index
    %20 = vector.load %arg9[%c3, %c0_14] : memref<9x512xf32, #tpu.memory_space<vmem>>, vector<1x512xf32>
    %21 = vector.broadcast %20 : vector<1x512xf32> to vector<2x512xf32>
    %22 = arith.mulf %19, %21 : vector<2x512xf32>
    %c6 = arith.constant 6 : index
    %c0_15 = arith.constant 0 : index
    %23 = vector.load %arg14[%c6, %c0_15] : memref<18x512xf32, #tpu.memory_space<vmem>>, vector<2x512xf32>
    tpu.vector_store %arg14[%c6, %c0_15], %22 {strides = array<i32>} : memref<18x512xf32, #tpu.memory_space<vmem>>, vector<2x512xf32>,
    %c8 = arith.constant 8 : index
    %c0_16 = arith.constant 0 : index
    %24 = vector.load %arg14[%c8, %c0_16] : memref<18x512xf32, #tpu.memory_space<vmem>>, vector<2x512xf32>
    tpu.vector_store %arg14[%c8, %c0_16], %1 {strides = array<i32>} : memref<18x512xf32, #tpu.memory_space<vmem>>, vector<2x512xf32>,
    %c511_i32 = arith.constant 511 : i32
    %25 = tpu.dynamic_rotate %1 by %c511_i32 dim 1 : vector<2x512xf32>, i32 -> vector<2x512xf32>
    %c5 = arith.constant 5 : index
    %c0_17 = arith.constant 0 : index
    %26 = vector.load %arg9[%c5, %c0_17] : memref<9x512xf32, #tpu.memory_space<vmem>>, vector<1x512xf32>
    %27 = vector.broadcast %26 : vector<1x512xf32> to vector<2x512xf32>
    %28 = arith.mulf %25, %27 : vector<2x512xf32>
    %c10 = arith.constant 10 : index
    %c0_18 = arith.constant 0 : index
    %29 = vector.load %arg14[%c10, %c0_18] : memref<18x512xf32, #tpu.memory_space<vmem>>, vector<2x512xf32>
    tpu.vector_store %arg14[%c10, %c0_18], %28 {strides = array<i32>} : memref<18x512xf32, #tpu.memory_space<vmem>>, vector<2x512xf32>,
    %c497_i32 = arith.constant 497 : i32
    %30 = tpu.dynamic_rotate %1 by %c497_i32 dim 1 : vector<2x512xf32>, i32 -> vector<2x512xf32>
    %c6_19 = arith.constant 6 : index
    %c0_20 = arith.constant 0 : index
    %31 = vector.load %arg9[%c6_19, %c0_20] : memref<9x512xf32, #tpu.memory_space<vmem>>, vector<1x512xf32>
    %32 = vector.broadcast %31 : vector<1x512xf32> to vector<2x512xf32>
    %33 = arith.mulf %30, %32 : vector<2x512xf32>
    %c12 = arith.constant 12 : index
    %c0_21 = arith.constant 0 : index
    %34 = vector.load %arg14[%c12, %c0_21] : memref<18x512xf32, #tpu.memory_space<vmem>>, vector<2x512xf32>
    tpu.vector_store %arg14[%c12, %c0_21], %33 {strides = array<i32>} : memref<18x512xf32, #tpu.memory_space<vmem>>, vector<2x512xf32>,
    %c496_i32 = arith.constant 496 : i32
    %35 = tpu.dynamic_rotate %1 by %c496_i32 dim 1 : vector<2x512xf32>, i32 -> vector<2x512xf32>
    %c7 = arith.constant 7 : index
    %c0_22 = arith.constant 0 : index
    %36 = vector.load %arg9[%c7, %c0_22] : memref<9x512xf32, #tpu.memory_space<vmem>>, vector<1x512xf32>
    %37 = vector.broadcast %36 : vector<1x512xf32> to vector<2x512xf32>
    %38 = arith.mulf %35, %37 : vector<2x512xf32>
    %c14 = arith.constant 14 : index
    %c0_23 = arith.constant 0 : index
    %39 = vector.load %arg14[%c14, %c0_23] : memref<18x512xf32, #tpu.memory_space<vmem>>, vector<2x512xf32>
    tpu.vector_store %arg14[%c14, %c0_23], %38 {strides = array<i32>} : memref<18x512xf32, #tpu.memory_space<vmem>>, vector<2x512xf32>,
    %c495_i32 = arith.constant 495 : i32
    %40 = tpu.dynamic_rotate %1 by %c495_i32 dim 1 : vector<2x512xf32>, i32 -> vector<2x512xf32>
    %c8_24 = arith.constant 8 : index
    %c0_25 = arith.constant 0 : index
    %41 = vector.load %arg9[%c8_24, %c0_25] : memref<9x512xf32, #tpu.memory_space<vmem>>, vector<1x512xf32>
    %42 = vector.broadcast %41 : vector<1x512xf32> to vector<2x512xf32>
    %43 = arith.mulf %40, %42 : vector<2x512xf32>
    %c16 = arith.constant 16 : index
    %c0_26 = arith.constant 0 : index
    %44 = vector.load %arg14[%c16, %c0_26] : memref<18x512xf32, #tpu.memory_space<vmem>>, vector<2x512xf32>
    tpu.vector_store %arg14[%c16, %c0_26], %43 {strides = array<i32>} : memref<18x512xf32, #tpu.memory_space<vmem>>, vector<2x512xf32>,
    %c0_27 = arith.constant 0 : index
    %c0_28 = arith.constant 0 : index
    %45 = vector.load %arg2[%c0_27, %c0_28] : memref<8x18xf32, #tpu.memory_space<vmem>>, vector<8x18xf32>
    %c0_29 = arith.constant 0 : index
    %c0_30 = arith.constant 0 : index
    %46 = vector.load %arg14[%c0_29, %c0_30] : memref<18x512xf32, #tpu.memory_space<vmem>>, vector<18x512xf32>
    %cst = arith.constant dense<0.000000e+00> : vector<8x512xf32>
    %47 = tpu.matmul %45, %46, %cst {dimension_numbers = #tpu.dot_dimension_numbers<[1], [0], [0], [1], [0, 0, 1, 1], [], []>} : vector<8x18xf32>, vector<18x512xf32>, vector<8x512xf32> -> vector<8x512xf32>
    %c0_31 = arith.constant 0 : index
    %c0_32 = arith.constant 0 : index
    %48 = vector.load %arg3[%c0_31, %c0_32] : memref<8x1xf32, #tpu.memory_space<vmem>>, vector<8x1xf32>
    %49 = vector.broadcast %48 : vector<8x1xf32> to vector<8x512xf32>
    %50 = arith.addf %47, %49 : vector<8x512xf32>
    %cst_33 = arith.constant 0.000000e+00 : f32
    %51 = vector.broadcast %cst_33 : f32 to vector<8x512xf32>
    %52 = arith.maximumf %50, %51 : vector<8x512xf32>
    %c0_34 = arith.constant 0 : index
    %c0_35 = arith.constant 0 : index
    %53 = vector.load %arg4[%c0_34, %c0_35] : memref<8x8xf32, #tpu.memory_space<vmem>>, vector<8x8xf32>
    %cst_36 = arith.constant dense<0.000000e+00> : vector<8x512xf32>
    %54 = tpu.matmul %53, %52, %cst_36 {dimension_numbers = #tpu.dot_dimension_numbers<[1], [0], [0], [1], [0, 0, 1, 1], [], []>} : vector<8x8xf32>, vector<8x512xf32>, vector<8x512xf32> -> vector<8x512xf32>
    %c0_37 = arith.constant 0 : index
    %c0_38 = arith.constant 0 : index
    %55 = vector.load %arg5[%c0_37, %c0_38] : memref<8x1xf32, #tpu.memory_space<vmem>>, vector<8x1xf32>
    %56 = vector.broadcast %55 : vector<8x1xf32> to vector<8x512xf32>
    %57 = arith.addf %54, %56 : vector<8x512xf32>
    %cst_39 = arith.constant 0.000000e+00 : f32
    %58 = vector.broadcast %cst_39 : f32 to vector<8x512xf32>
    %59 = arith.maximumf %57, %58 : vector<8x512xf32>
    %c17_i32_40 = arith.constant 17 : i32
    %60 = tpu.dynamic_rotate %59 by %c17_i32_40 dim 1 : vector<8x512xf32>, i32 -> vector<8x512xf32>
    %c0_41 = arith.constant 0 : index
    %c0_42 = arith.constant 0 : index
    %61 = vector.load %arg9[%c0_41, %c0_42] : memref<9x512xf32, #tpu.memory_space<vmem>>, vector<1x512xf32>
    %62 = vector.broadcast %61 : vector<1x512xf32> to vector<8x512xf32>
    %63 = arith.mulf %60, %62 : vector<8x512xf32>
    %cst_43 = arith.constant 1.000000e+00 : f32
    %64 = vector.broadcast %cst_43 : f32 to vector<1x512xf32>
    %65 = arith.subf %64, %61 : vector<1x512xf32>
    %cst_44 = arith.constant 1.000000e+00 : f32
    %66 = vector.broadcast %cst_44 : f32 to vector<1x512xf32>
    %67 = arith.mulf %65, %66 : vector<1x512xf32>
    %68 = vector.broadcast %67 : vector<1x512xf32> to vector<8x512xf32>
    %69 = arith.addf %63, %68 : vector<8x512xf32>
    %c0_45 = arith.constant 0 : index
    %c0_46 = arith.constant 0 : index
    %70 = vector.load %arg15[%c0_45, %c0_46] : memref<72x512xf32, #tpu.memory_space<vmem>>, vector<8x512xf32>
    tpu.vector_store %arg15[%c0_45, %c0_46], %69 {strides = array<i32>} : memref<72x512xf32, #tpu.memory_space<vmem>>, vector<8x512xf32>,
    %c16_i32_47 = arith.constant 16 : i32
    %71 = tpu.dynamic_rotate %59 by %c16_i32_47 dim 1 : vector<8x512xf32>, i32 -> vector<8x512xf32>
    %c1_48 = arith.constant 1 : index
    %c0_49 = arith.constant 0 : index
    %72 = vector.load %arg9[%c1_48, %c0_49] : memref<9x512xf32, #tpu.memory_space<vmem>>, vector<1x512xf32>
    %73 = vector.broadcast %72 : vector<1x512xf32> to vector<8x512xf32>
    %74 = arith.mulf %71, %73 : vector<8x512xf32>
    %cst_50 = arith.constant 1.000000e+00 : f32
    %75 = vector.broadcast %cst_50 : f32 to vector<1x512xf32>
    %76 = arith.subf %75, %72 : vector<1x512xf32>
    %cst_51 = arith.constant 1.000000e+00 : f32
    %77 = vector.broadcast %cst_51 : f32 to vector<1x512xf32>
    %78 = arith.mulf %76, %77 : vector<1x512xf32>
    %79 = vector.broadcast %78 : vector<1x512xf32> to vector<8x512xf32>
    %80 = arith.addf %74, %79 : vector<8x512xf32>
    %c8_52 = arith.constant 8 : index
    %c0_53 = arith.constant 0 : index
    %81 = vector.load %arg15[%c8_52, %c0_53] : memref<72x512xf32, #tpu.memory_space<vmem>>, vector<8x512xf32>
    tpu.vector_store %arg15[%c8_52, %c0_53], %80 {strides = array<i32>} : memref<72x512xf32, #tpu.memory_space<vmem>>, vector<8x512xf32>,
    %c15_i32_54 = arith.constant 15 : i32
    %82 = tpu.dynamic_rotate %59 by %c15_i32_54 dim 1 : vector<8x512xf32>, i32 -> vector<8x512xf32>
    %c2_55 = arith.constant 2 : index
    %c0_56 = arith.constant 0 : index
    %83 = vector.load %arg9[%c2_55, %c0_56] : memref<9x512xf32, #tpu.memory_space<vmem>>, vector<1x512xf32>
    %84 = vector.broadcast %83 : vector<1x512xf32> to vector<8x512xf32>
    %85 = arith.mulf %82, %84 : vector<8x512xf32>
    %cst_57 = arith.constant 1.000000e+00 : f32
    %86 = vector.broadcast %cst_57 : f32 to vector<1x512xf32>
    %87 = arith.subf %86, %83 : vector<1x512xf32>
    %cst_58 = arith.constant 1.000000e+00 : f32
    %88 = vector.broadcast %cst_58 : f32 to vector<1x512xf32>
    %89 = arith.mulf %87, %88 : vector<1x512xf32>
    %90 = vector.broadcast %89 : vector<1x512xf32> to vector<8x512xf32>
    %91 = arith.addf %85, %90 : vector<8x512xf32>
    %c16_59 = arith.constant 16 : index
    %c0_60 = arith.constant 0 : index
    %92 = vector.load %arg15[%c16_59, %c0_60] : memref<72x512xf32, #tpu.memory_space<vmem>>, vector<8x512xf32>
    tpu.vector_store %arg15[%c16_59, %c0_60], %91 {strides = array<i32>} : memref<72x512xf32, #tpu.memory_space<vmem>>, vector<8x512xf32>,
    %c1_i32_61 = arith.constant 1 : i32
    %93 = tpu.dynamic_rotate %59 by %c1_i32_61 dim 1 : vector<8x512xf32>, i32 -> vector<8x512xf32>
    %c3_62 = arith.constant 3 : index
    %c0_63 = arith.constant 0 : index
    %94 = vector.load %arg9[%c3_62, %c0_63] : memref<9x512xf32, #tpu.memory_space<vmem>>, vector<1x512xf32>
    %95 = vector.broadcast %94 : vector<1x512xf32> to vector<8x512xf32>
    %96 = arith.mulf %93, %95 : vector<8x512xf32>
    %cst_64 = arith.constant 1.000000e+00 : f32
    %97 = vector.broadcast %cst_64 : f32 to vector<1x512xf32>
    %98 = arith.subf %97, %94 : vector<1x512xf32>
    %cst_65 = arith.constant 1.000000e+00 : f32
    %99 = vector.broadcast %cst_65 : f32 to vector<1x512xf32>
    %100 = arith.mulf %98, %99 : vector<1x512xf32>
    %101 = vector.broadcast %100 : vector<1x512xf32> to vector<8x512xf32>
    %102 = arith.addf %96, %101 : vector<8x512xf32>
    %c24 = arith.constant 24 : index
    %c0_66 = arith.constant 0 : index
    %103 = vector.load %arg15[%c24, %c0_66] : memref<72x512xf32, #tpu.memory_space<vmem>>, vector<8x512xf32>
    tpu.vector_store %arg15[%c24, %c0_66], %102 {strides = array<i32>} : memref<72x512xf32, #tpu.memory_space<vmem>>, vector<8x512xf32>,
    %c4_67 = arith.constant 4 : index
    %c0_68 = arith.constant 0 : index
    %104 = vector.load %arg9[%c4_67, %c0_68] : memref<9x512xf32, #tpu.memory_space<vmem>>, vector<1x512xf32>
    %105 = vector.broadcast %104 : vector<1x512xf32> to vector<8x512xf32>
    %106 = arith.mulf %59, %105 : vector<8x512xf32>
    %cst_69 = arith.constant 1.000000e+00 : f32
    %107 = vector.broadcast %cst_69 : f32 to vector<1x512xf32>
    %108 = arith.subf %107, %104 : vector<1x512xf32>
    %cst_70 = arith.constant 1.000000e+00 : f32
    %109 = vector.broadcast %cst_70 : f32 to vector<1x512xf32>
    %110 = arith.mulf %108, %109 : vector<1x512xf32>
    %111 = vector.broadcast %110 : vector<1x512xf32> to vector<8x512xf32>
    %112 = arith.addf %106, %111 : vector<8x512xf32>
    %c32 = arith.constant 32 : index
    %c0_71 = arith.constant 0 : index
    %113 = vector.load %arg15[%c32, %c0_71] : memref<72x512xf32, #tpu.memory_space<vmem>>, vector<8x512xf32>
    tpu.vector_store %arg15[%c32, %c0_71], %112 {strides = array<i32>} : memref<72x512xf32, #tpu.memory_space<vmem>>, vector<8x512xf32>,
    %c511_i32_72 = arith.constant 511 : i32
    %114 = tpu.dynamic_rotate %59 by %c511_i32_72 dim 1 : vector<8x512xf32>, i32 -> vector<8x512xf32>
    %c5_73 = arith.constant 5 : index
    %c0_74 = arith.constant 0 : index
    %115 = vector.load %arg9[%c5_73, %c0_74] : memref<9x512xf32, #tpu.memory_space<vmem>>, vector<1x512xf32>
    %116 = vector.broadcast %115 : vector<1x512xf32> to vector<8x512xf32>
    %117 = arith.mulf %114, %116 : vector<8x512xf32>
    %cst_75 = arith.constant 1.000000e+00 : f32
    %118 = vector.broadcast %cst_75 : f32 to vector<1x512xf32>
    %119 = arith.subf %118, %115 : vector<1x512xf32>
    %cst_76 = arith.constant 1.000000e+00 : f32
    %120 = vector.broadcast %cst_76 : f32 to vector<1x512xf32>
    %121 = arith.mulf %119, %120 : vector<1x512xf32>
    %122 = vector.broadcast %121 : vector<1x512xf32> to vector<8x512xf32>
    %123 = arith.addf %117, %122 : vector<8x512xf32>
    %c40 = arith.constant 40 : index
    %c0_77 = arith.constant 0 : index
    %124 = vector.load %arg15[%c40, %c0_77] : memref<72x512xf32, #tpu.memory_space<vmem>>, vector<8x512xf32>
    tpu.vector_store %arg15[%c40, %c0_77], %123 {strides = array<i32>} : memref<72x512xf32, #tpu.memory_space<vmem>>, vector<8x512xf32>,
    %c497_i32_78 = arith.constant 497 : i32
    %125 = tpu.dynamic_rotate %59 by %c497_i32_78 dim 1 : vector<8x512xf32>, i32 -> vector<8x512xf32>
    %c6_79 = arith.constant 6 : index
    %c0_80 = arith.constant 0 : index
    %126 = vector.load %arg9[%c6_79, %c0_80] : memref<9x512xf32, #tpu.memory_space<vmem>>, vector<1x512xf32>
    %127 = vector.broadcast %126 : vector<1x512xf32> to vector<8x512xf32>
    %128 = arith.mulf %125, %127 : vector<8x512xf32>
    %cst_81 = arith.constant 1.000000e+00 : f32
    %129 = vector.broadcast %cst_81 : f32 to vector<1x512xf32>
    %130 = arith.subf %129, %126 : vector<1x512xf32>
    %cst_82 = arith.constant 1.000000e+00 : f32
    %131 = vector.broadcast %cst_82 : f32 to vector<1x512xf32>
    %132 = arith.mulf %130, %131 : vector<1x512xf32>
    %133 = vector.broadcast %132 : vector<1x512xf32> to vector<8x512xf32>
    %134 = arith.addf %128, %133 : vector<8x512xf32>
    %c48 = arith.constant 48 : index
    %c0_83 = arith.constant 0 : index
    %135 = vector.load %arg15[%c48, %c0_83] : memref<72x512xf32, #tpu.memory_space<vmem>>, vector<8x512xf32>
    tpu.vector_store %arg15[%c48, %c0_83], %134 {strides = array<i32>} : memref<72x512xf32, #tpu.memory_space<vmem>>, vector<8x512xf32>,
    %c496_i32_84 = arith.constant 496 : i32
    %136 = tpu.dynamic_rotate %59 by %c496_i32_84 dim 1 : vector<8x512xf32>, i32 -> vector<8x512xf32>
    %c7_85 = arith.constant 7 : index
    %c0_86 = arith.constant 0 : index
    %137 = vector.load %arg9[%c7_85, %c0_86] : memref<9x512xf32, #tpu.memory_space<vmem>>, vector<1x512xf32>
    %138 = vector.broadcast %137 : vector<1x512xf32> to vector<8x512xf32>
    %139 = arith.mulf %136, %138 : vector<8x512xf32>
    %cst_87 = arith.constant 1.000000e+00 : f32
    %140 = vector.broadcast %cst_87 : f32 to vector<1x512xf32>
    %141 = arith.subf %140, %137 : vector<1x512xf32>
    %cst_88 = arith.constant 1.000000e+00 : f32
    %142 = vector.broadcast %cst_88 : f32 to vector<1x512xf32>
    %143 = arith.mulf %141, %142 : vector<1x512xf32>
    %144 = vector.broadcast %143 : vector<1x512xf32> to vector<8x512xf32>
    %145 = arith.addf %139, %144 : vector<8x512xf32>
    %c56 = arith.constant 56 : index
    %c0_89 = arith.constant 0 : index
    %146 = vector.load %arg15[%c56, %c0_89] : memref<72x512xf32, #tpu.memory_space<vmem>>, vector<8x512xf32>
    tpu.vector_store %arg15[%c56, %c0_89], %145 {strides = array<i32>} : memref<72x512xf32, #tpu.memory_space<vmem>>, vector<8x512xf32>,
    %c495_i32_90 = arith.constant 495 : i32
    %147 = tpu.dynamic_rotate %59 by %c495_i32_90 dim 1 : vector<8x512xf32>, i32 -> vector<8x512xf32>
    %c8_91 = arith.constant 8 : index
    %c0_92 = arith.constant 0 : index
    %148 = vector.load %arg9[%c8_91, %c0_92] : memref<9x512xf32, #tpu.memory_space<vmem>>, vector<1x512xf32>
    %149 = vector.broadcast %148 : vector<1x512xf32> to vector<8x512xf32>
    %150 = arith.mulf %147, %149 : vector<8x512xf32>
    %cst_93 = arith.constant 1.000000e+00 : f32
    %151 = vector.broadcast %cst_93 : f32 to vector<1x512xf32>
    %152 = arith.subf %151, %148 : vector<1x512xf32>
    %cst_94 = arith.constant 1.000000e+00 : f32
    %153 = vector.broadcast %cst_94 : f32 to vector<1x512xf32>
    %154 = arith.mulf %152, %153 : vector<1x512xf32>
    %155 = vector.broadcast %154 : vector<1x512xf32> to vector<8x512xf32>
    %156 = arith.addf %150, %155 : vector<8x512xf32>
    %c64 = arith.constant 64 : index
    %c0_95 = arith.constant 0 : index
    %157 = vector.load %arg15[%c64, %c0_95] : memref<72x512xf32, #tpu.memory_space<vmem>>, vector<8x512xf32>
    tpu.vector_store %arg15[%c64, %c0_95], %156 {strides = array<i32>} : memref<72x512xf32, #tpu.memory_space<vmem>>, vector<8x512xf32>,
    %c0_96 = arith.constant 0 : index
    %c0_97 = arith.constant 0 : index
    %158 = vector.load %arg6[%c0_96, %c0_97] : memref<4x72xf32, #tpu.memory_space<vmem>>, vector<4x72xf32>
    %c0_98 = arith.constant 0 : index
    %c0_99 = arith.constant 0 : index
    %159 = vector.load %arg15[%c0_98, %c0_99] : memref<72x512xf32, #tpu.memory_space<vmem>>, vector<72x512xf32>
    %cst_100 = arith.constant dense<0.000000e+00> : vector<4x512xf32>
    %160 = tpu.matmul %158, %159, %cst_100 {dimension_numbers = #tpu.dot_dimension_numbers<[1], [0], [0], [1], [0, 0, 1, 1], [], []>} : vector<4x72xf32>, vector<72x512xf32>, vector<4x512xf32> -> vector<4x512xf32>
    %c0_101 = arith.constant 0 : index
    %c0_102 = arith.constant 0 : index
    %161 = vector.load %arg7[%c0_101, %c0_102] : memref<4x1xf32, #tpu.memory_space<vmem>>, vector<4x1xf32>
    %162 = vector.broadcast %161 : vector<4x1xf32> to vector<4x512xf32>
    %163 = arith.addf %160, %162 : vector<4x512xf32>
    %c0_103 = arith.constant 0 : index
    %c0_104 = arith.constant 0 : index
    %164 = vector.load %arg8[%c0_103, %c0_104] : memref<4x1xf32, #tpu.memory_space<vmem>>, vector<4x1xf32>
    %cst_105 = arith.constant 3.000000e+00 : f32
    %165 = vector.broadcast %cst_105 : f32 to vector<4x1xf32>
    %166 = arith.mulf %164, %165 : vector<4x1xf32>
    %167 = math.exp %166 : vector<4x1xf32>
    %168 = vector.broadcast %167 : vector<4x1xf32> to vector<4x512xf32>
    %169 = arith.mulf %163, %168 : vector<4x512xf32>
    %170 = vector.extract_strided_slice %169 {offsets = [0, 0], sizes = [2, 512], strides = [1, 1]} : vector<4x512xf32> to vector<2x512xf32>
    %cst_106 = arith.constant 2.000000e+00 : f32
    %171 = vector.broadcast %cst_106 : f32 to vector<2x512xf32>
    %172 = arith.addf %170, %171 : vector<2x512xf32>
    %173 = arith.negf %172 : vector<2x512xf32>
    %174 = math.exp %173 : vector<2x512xf32>
    %cst_107 = arith.constant 1.000000e+00 : f32
    %175 = vector.broadcast %cst_107 : f32 to vector<2x512xf32>
    %176 = arith.addf %175, %174 : vector<2x512xf32>
    %177 = arith.divf %175, %176 : vector<2x512xf32>
    %178 = vector.extract_strided_slice %169 {offsets = [2, 0], sizes = [2, 512], strides = [1, 1]} : vector<4x512xf32> to vector<2x512xf32>
    %179 = arith.mulf %3, %177 : vector<2x512xf32>
    %180 = arith.addf %179, %178 : vector<2x512xf32>
    %c0_108 = arith.constant 0 : index
    %c0_109 = arith.constant 0 : index
    %c0_110 = arith.constant 0 : index
    %181 = vector.load %arg12[%c0_108, %c0_109, %c0_110] : memref<1x2x512xf32, #tpu.memory_space<vmem>>, vector<1x2x512xf32>
    %182 = vector.shape_cast %181 : vector<1x2x512xf32> to vector<2x512xf32>
    %183 = vector.shape_cast %180 : vector<2x512xf32> to vector<1x2x512xf32>
    tpu.vector_store %arg12[%c0_108, %c0_109, %c0_110], %183 {strides = array<i32>} : memref<1x2x512xf32, #tpu.memory_space<vmem>>, vector<1x2x512xf32>,
    %184 = math.log %177 : vector<2x512xf32>
    %cst_111 = arith.constant dense<0.000000e+00> : vector<512xf32>
    %185 = vector.multi_reduction <add>, %184, %cst_111 [0] : vector<2x512xf32> to vector<512xf32>
    %186 = vector.shape_cast %185 : vector<512xf32> to vector<1x512xf32>
    %c0_112 = arith.constant 0 : index
    %c0_113 = arith.constant 0 : index
    %187 = vector.load %arg10[%c0_112, %c0_113] : memref<2x512xf32, #tpu.memory_space<vmem>>, vector<2x512xf32>
    %188 = vector.broadcast %186 : vector<1x512xf32> to vector<2x512xf32>
    %189 = arith.mulf %187, %188 : vector<2x512xf32>
    %cst_114 = arith.constant dense<0.000000e+00> : vector<2xf32>
    %190 = vector.multi_reduction <add>, %189, %cst_114 [1] : vector<2x512xf32> to vector<2xf32>
    %191 = vector.shape_cast %190 : vector<2xf32> to vector<2x1xf32>
    %c0_115 = arith.constant 0 : index
    %c0_116 = arith.constant 0 : index
    %192 = vector.load %arg11[%c0_115, %c0_116] : memref<2x1xf32, #tpu.memory_space<vmem>>, vector<2x1xf32>
    %193 = arith.addf %192, %191 : vector<2x1xf32>
    %c0_117 = arith.constant 0 : index
    %c0_118 = arith.constant 0 : index
    %194 = vector.load %arg13[%c0_117, %c0_118] : memref<2x1xf32, #tpu.memory_space<vmem>>, vector<2x1xf32>
    tpu.vector_store %arg13[%c0_117, %c0_118], %193 {strides = array<i32>} : memref<2x1xf32, #tpu.memory_space<vmem>>, vector<2x1xf32>,
    return
  }
  func.func @transform_0(%arg0: i32) -> (i32, i32, i32) {
    %c0_i32 = arith.constant 0 : i32
    %c0_i32_0 = arith.constant 0 : i32
    %c0_i32_1 = arith.constant 0 : i32
    %c0_i32_2 = arith.constant 0 : i32
    return %c0_i32, %c0_i32_0, %c0_i32_1 : i32, i32, i32
  }
  func.func @transform_1(%arg0: i32) -> (i32, i32) {
    %c0_i32 = arith.constant 0 : i32
    %c0_i32_0 = arith.constant 0 : i32
    %c0_i32_1 = arith.constant 0 : i32
    return %c0_i32, %c0_i32_0 : i32, i32
  }
  func.func @transform_2(%arg0: i32) -> (i32, i32) {
    %c0_i32 = arith.constant 0 : i32
    %c0_i32_0 = arith.constant 0 : i32
    %c0_i32_1 = arith.constant 0 : i32
    return %c0_i32, %c0_i32_0 : i32, i32
  }
  func.func @transform_3(%arg0: i32) -> (i32, i32) {
    %c0_i32 = arith.constant 0 : i32
    %c0_i32_0 = arith.constant 0 : i32
    %c0_i32_1 = arith.constant 0 : i32
    return %c0_i32, %c0_i32_0 : i32, i32
  }
  func.func @transform_4(%arg0: i32) -> (i32, i32) {
    %c0_i32 = arith.constant 0 : i32
    %c0_i32_0 = arith.constant 0 : i32
    %c0_i32_1 = arith.constant 0 : i32
    return %c0_i32, %c0_i32_0 : i32, i32
  }
  func.func @transform_5(%arg0: i32) -> (i32, i32) {
    %c0_i32 = arith.constant 0 : i32
    %c0_i32_0 = arith.constant 0 : i32
    %c0_i32_1 = arith.constant 0 : i32
    return %c0_i32, %c0_i32_0 : i32, i32
  }
  func.func @transform_6(%arg0: i32) -> (i32, i32) {
    %c0_i32 = arith.constant 0 : i32
    %c0_i32_0 = arith.constant 0 : i32
    %c0_i32_1 = arith.constant 0 : i32
    return %c0_i32, %c0_i32_0 : i32, i32
  }
  func.func @transform_7(%arg0: i32) -> (i32, i32) {
    %c0_i32 = arith.constant 0 : i32
    %c0_i32_0 = arith.constant 0 : i32
    %c0_i32_1 = arith.constant 0 : i32
    return %c0_i32, %c0_i32_0 : i32, i32
  }
  func.func @transform_8(%arg0: i32) -> (i32, i32) {
    %c0_i32 = arith.constant 0 : i32
    %c0_i32_0 = arith.constant 0 : i32
    %c0_i32_1 = arith.constant 0 : i32
    return %c0_i32, %c0_i32_0 : i32, i32
  }
  func.func @transform_9(%arg0: i32) -> (i32, i32) {
    %c0_i32 = arith.constant 0 : i32
    %c0_i32_0 = arith.constant 0 : i32
    %c0_i32_1 = arith.constant 0 : i32
    return %c0_i32, %c0_i32_0 : i32, i32
  }
  func.func @transform_10(%arg0: i32) -> (i32, i32) {
    %c0_i32 = arith.constant 0 : i32
    %c0_i32_0 = arith.constant 0 : i32
    %c0_i32_1 = arith.constant 0 : i32
    return %c0_i32, %c0_i32_0 : i32, i32
  }
  func.func @transform_11(%arg0: i32) -> (i32, i32, i32) {
    %c1_i32 = arith.constant 1 : i32
    %c0_i32 = arith.constant 0 : i32
    %c0_i32_0 = arith.constant 0 : i32
    %c0_i32_1 = arith.constant 0 : i32
    return %c1_i32, %c0_i32, %c0_i32_0 : i32, i32, i32
  }
  func.func @transform_12(%arg0: i32) -> (i32, i32) {
    %c0_i32 = arith.constant 0 : i32
    %c0_i32_0 = arith.constant 0 : i32
    %c0_i32_1 = arith.constant 0 : i32
    return %c0_i32, %c0_i32_0 : i32, i32
  }
}

</mosaic_0001>

<llo_original>
// kernel: affine_coupling_forward.1
$region0: #{affine_coupling_forward.1}
  #allocation0 [shape = 'u32[]', space=smem, size = 0x4, offset = 0x4, fixed_abs, tag = 'smem constant byte address 0x4 - core index']
  #allocation1 [shape = 'u32[144,128]{1,0:T(1,128)}', space=vmem, size = 0x12000, scoped, tag = 'internal scratch']
  #allocation2 [shape = 'f32[18,512]{1,0:T(8,128)}', space=vmem, size = 0xc000, scoped, tag = 'scratch operand']
  #allocation3 [shape = 'f32[72,512]{1,0:T(8,128)}', space=vmem, size = 0x24000, scoped, tag = 'scratch operand']
  %s0 = inlined_call_operand.vmem [shape: f32[2,2,512], index: 0, kind: input, shape index: {}, may-alias: {0,11}]
  %s1 = inlined_call_operand.vmem [shape: f32[8,18], index: 1, kind: input, shape index: {}]
  %s2 = inlined_call_operand.vmem [shape: f32[8,1], index: 2, kind: input, shape index: {}]
  %s3 = inlined_call_operand.vmem [shape: f32[8,8], index: 3, kind: input, shape index: {}]
  %s4 = inlined_call_operand.vmem [shape: f32[8,1], index: 4, kind: input, shape index: {}]
  %s5 = inlined_call_operand.vmem [shape: f32[4,72], index: 5, kind: input, shape index: {}]
  %s6 = inlined_call_operand.vmem [shape: f32[4,1], index: 6, kind: input, shape index: {}]
  %s7 = inlined_call_operand.vmem [shape: f32[4,1], index: 7, kind: input, shape index: {}]
  %s8 = inlined_call_operand.vmem [shape: f32[9,512], index: 8, kind: input, shape index: {}]
  %s9 = inlined_call_operand.vmem [shape: f32[2,512], index: 9, kind: input, shape index: {}]
  %s10 = inlined_call_operand.vmem [shape: f32[2,1], index: 10, kind: input, shape index: {}]
  %s11 = inlined_call_operand.vmem [shape: f32[2,2,512], index: 11, kind: output, shape index: {0}, may-alias: {0,11}]
  %s12 = inlined_call_operand.vmem [shape: f32[2,1], index: 12, kind: output, shape index: {1}]
  %13 = xla_tuple %s11, %s12
  %s14 = sld [smem:[#allocation0]]
  $region62: #{affine_coupling_forward.1} parent=0
    _
  %s16 = ssub.s32 1, %s14
  %s17 = scalar_select 0, %s16, %s14
  // Predicated region
  $region2: #{affine_coupling_forward.1} parent=0 // pred_check
    _
  $region3: #{affine_coupling_forward.1} parent=0 // pred_check_branch
    %19 = sbr.rel (0) target = $region5
  $region4: #{affine_coupling_forward.1} parent=0 // pred_region
    _
  $region5: #{affine_coupling_forward.1} parent=0 // pred_fallthru
    _
  // Predicated region
  $region6: #{affine_coupling_forward.1} parent=0 // pred_check
    _
  $region7: #{affine_coupling_forward.1} parent=0 // pred_check_branch
    %21 = sbr.rel (0) target = $region9
  $region8: #{affine_coupling_forward.1} parent=0 // pred_region
    _
  $region9: #{affine_coupling_forward.1} parent=0 // pred_fallthru
    _
  // Predicated region
  $region10: #{affine_coupling_forward.1} parent=0 // pred_check
    _
  $region11: #{affine_coupling_forward.1} parent=0 // pred_check_branch
    %23 = sbr.rel (0) target = $region13
  $region12: #{affine_coupling_forward.1} parent=0 // pred_region
    _
  $region13: #{affine_coupling_forward.1} parent=0 // pred_fallthru
    _
  // Predicated region
  $region14: #{affine_coupling_forward.1} parent=0 // pred_check
    _
  $region15: #{affine_coupling_forward.1} parent=0 // pred_check_branch
    %25 = sbr.rel (0) target = $region17
  $region16: #{affine_coupling_forward.1} parent=0 // pred_region
    _
  $region17: #{affine_coupling_forward.1} parent=0 // pred_fallthru
    _
  // Predicated region
  $region18: #{affine_coupling_forward.1} parent=0 // pred_check
    _
  $region19: #{affine_coupling_forward.1} parent=0 // pred_check_branch
    %27 = sbr.rel (0) target = $region21
  $region20: #{affine_coupling_forward.1} parent=0 // pred_region
    _
  $region21: #{affine_coupling_forward.1} parent=0 // pred_fallthru
    _
  // Predicated region
  $region22: #{affine_coupling_forward.1} parent=0 // pred_check
    _
  $region23: #{affine_coupling_forward.1} parent=0 // pred_check_branch
    %29 = sbr.rel (0) target = $region25
  $region24: #{affine_coupling_forward.1} parent=0 // pred_region
    _
  $region25: #{affine_coupling_forward.1} parent=0 // pred_fallthru
    _
  // Predicated region
  $region26: #{affine_coupling_forward.1} parent=0 // pred_check
    _
  $region27: #{affine_coupling_forward.1} parent=0 // pred_check_branch
    %31 = sbr.rel (0) target = $region29
  $region28: #{affine_coupling_forward.1} parent=0 // pred_region
    _
  $region29: #{affine_coupling_forward.1} parent=0 // pred_fallthru
    _
  // Predicated region
  $region30: #{affine_coupling_forward.1} parent=0 // pred_check
    _
  $region31: #{affine_coupling_forward.1} parent=0 // pred_check_branch
    %33 = sbr.rel (0) target = $region33
  $region32: #{affine_coupling_forward.1} parent=0 // pred_region
    _
  $region33: #{affine_coupling_forward.1} parent=0 // pred_fallthru
    _
  // Predicated region
  $region34: #{affine_coupling_forward.1} parent=0 // pred_check
    _
  $region35: #{affine_coupling_forward.1} parent=0 // pred_check_branch
    %35 = sbr.rel (0) target = $region37
  $region36: #{affine_coupling_forward.1} parent=0 // pred_region
    _
  $region37: #{affine_coupling_forward.1} parent=0 // pred_fallthru
    _
  // Predicated region
  $region38: #{affine_coupling_forward.1} parent=0 // pred_check
    _
  $region39: #{affine_coupling_forward.1} parent=0 // pred_check_branch
    %37 = sbr.rel (0) target = $region41
  $region40: #{affine_coupling_forward.1} parent=0 // pred_region
    _
  $region41: #{affine_coupling_forward.1} parent=0 // pred_fallthru
    _
  // Predicated region
  $region42: #{affine_coupling_forward.1} parent=0 // pred_check
    _
  $region43: #{affine_coupling_forward.1} parent=0 // pred_check_branch
    %39 = sbr.rel (0) target = $region45
  $region44: #{affine_coupling_forward.1} parent=0 // pred_region
    _
  $region45: #{affine_coupling_forward.1} parent=0 // pred_fallthru
    _
  %s40 = scalar_lea.vmem %s11, 8
  %s41 = scalar_lea.vmem %s11, 8
  %v42 = vld [vmem:[%s0] sm:$0xff]
  %s43 = scalar_lea.vmem %s0, 8
  %v44 = vld [vmem:[%s43] sm:$0xff]
  %v46 = vcombine.high %v42, %v42
  %v48 = vunpack.c.l.s4 1983009808
  %v49 = vunpack.c.0.s8 %v48
  %v50 = vlaneseq
  %v51 = vshrl.u32 %v50, 7
  %v52 = vsub.s32 %v49, %v51
  %v53 = vrot.slane %v42, %v52
  %v55 = vunpack.c.l.s4 1983009808
  %v56 = vunpack.c.0.s8 %v55
  %v57 = vlaneseq
  %v58 = vshrl.u32 %v57, 7
  %v59 = vsub.s32 %v56, %v58
  %v60 = vrot.slane %v46, %v59
  %v61 = vcombine.high %v53, %v53
  %v62 = vcombine.high %v60, %v60
  %67 = vrot.lane.b32.xlu0 %v53, 17
  %v68 = vpop.permute.xlu0 %67
  %69 = vrot.lane.b32.xlu0 %v61, 17
  %v70 = vpop.permute.xlu0 %69
  %71 = vrot.lane.b32.xlu0 %v60, 17
  %v72 = vpop.permute.xlu0 %71
  %73 = vrot.lane.b32.xlu0 %v62, 17
  %v74 = vpop.permute.xlu0 %73
  %v75 = vlaneseq
  %v76 = vand.u32 %v75, 127
  %vm77 = vcmp.lt.s32.totalorder %v76, 17
  %v78 = vsel %vm77, %v72, %v74
  %v79 = vsel %vm77, %v70, %v72
  %v80 = vsel %vm77, %v68, %v70
  %v81 = vsel %vm77, %v74, %v68
  %v82 = vld [vmem:[%s8] ss:$8 sm:$0xf]
  %v84 = vlaneseq
  %v85 = vshrl.u32 %v84, 7
  %v86 = vsub.s32 0, %v85
  %v87 = vrot.slane %v82, %v86
  %v88 = vlaneseq
  %v89 = vshrl.u32 %v88, 7
  %v90 = vsub.s32 1, %v89
  %v91 = vrot.slane %v82, %v90
  %v92 = vlaneseq
  %v93 = vshrl.u32 %v92, 7
  %v94 = vsub.s32 2, %v93
  %v95 = vrot.slane %v82, %v94
  %v96 = vlaneseq
  %v97 = vshrl.u32 %v96, 7
  %v98 = vsub.s32 3, %v97
  %v99 = vrot.slane %v82, %v98
  %v104 = vmul.f32 %v81, %v87
  %v105 = vmul.f32 %v80, %v91
  %v106 = vmul.f32 %v79, %v95
  %v107 = vmul.f32 %v78, %v99
  %108 = vst [vmem:[#allocation2] sm:$0x3] %v104
  %109 = vst [vmem:[#allocation2 + $0x8] sm:$0x3] %v105
  %110 = vst [vmem:[#allocation2 + $0x10] sm:$0x3] %v106
  %111 = vst [vmem:[#allocation2 + $0x18] sm:$0x3] %v107
  %112 = vrot.lane.b32.xlu0 %v53, 16
  %v113 = vpop.permute.xlu0 %112
  %114 = vrot.lane.b32.xlu0 %v61, 16
  %v115 = vpop.permute.xlu0 %114
  %116 = vrot.lane.b32.xlu0 %v60, 16
  %v117 = vpop.permute.xlu0 %116
  %118 = vrot.lane.b32.xlu0 %v62, 16
  %v119 = vpop.permute.xlu0 %118
  %vm120 = vcmp.lt.s32.totalorder %v76, 16
  %v121 = vsel %vm120, %v117, %v119
  %v122 = vsel %vm120, %v115, %v117
  %v123 = vsel %vm120, %v113, %v115
  %v124 = vsel %vm120, %v119, %v113
  %s125 = scalar_lea.vmem %s8, 1
  %v126 = vld [vmem:[%s125] ss:$8 sm:$0xf]
  %v128 = vlaneseq
  %v129 = vshrl.u32 %v128, 7
  %v130 = vsub.s32 0, %v129
  %v131 = vrot.slane %v126, %v130
  %v132 = vlaneseq
  %v133 = vshrl.u32 %v132, 7
  %v134 = vsub.s32 1, %v133
  %v135 = vrot.slane %v126, %v134
  %v136 = vlaneseq
  %v137 = vshrl.u32 %v136, 7
  %v138 = vsub.s32 2, %v137
  %v139 = vrot.slane %v126, %v138
  %v140 = vlaneseq
  %v141 = vshrl.u32 %v140, 7
  %v142 = vsub.s32 3, %v141
  %v143 = vrot.slane %v126, %v142
  %v148 = vmul.f32 %v124, %v131
  %v149 = vmul.f32 %v123, %v135
  %v150 = vmul.f32 %v122, %v139
  %v151 = vmul.f32 %v121, %v143
  %v156 = vrot.slane %v148, 6
  %v157 = vrot.slane %v149, 6
  %v158 = vrot.slane %v150, 6
  %v159 = vrot.slane %v151, 6
  %164 = vst [vmem:[#allocation2] sm:$0xc] %v156
  %165 = vst [vmem:[#allocation2 + $0x8] sm:$0xc] %v157
  %166 = vst [vmem:[#allocation2 + $0x10] sm:$0xc] %v158
  %167 = vst [vmem:[#allocation2 + $0x18] sm:$0xc] %v159
  %168 = vrot.lane.b32.xlu0 %v53, 15
  %v169 = vpop.permute.xlu0 %168
  %170 = vrot.lane.b32.xlu0 %v61, 15
  %v171 = vpop.permute.xlu0 %170
  %172 = vrot.lane.b32.xlu0 %v60, 15
  %v173 = vpop.permute.xlu0 %172
  %174 = vrot.lane.b32.xlu0 %v62, 15
  %v175 = vpop.permute.xlu0 %174
  %vm176 = vcmp.lt.s32.totalorder %v76, 15
  %v177 = vsel %vm176, %v173, %v175
  %v178 = vsel %vm176, %v171, %v173
  %v179 = vsel %vm176, %v169, %v171
  %v180 = vsel %vm176, %v175, %v169
  %s181 = scalar_lea.vmem %s8, 2
  %v182 = vld [vmem:[%s181] ss:$8 sm:$0xf]
  %v184 = vlaneseq
  %v185 = vshrl.u32 %v184, 7
  %v186 = vsub.s32 0, %v185
  %v187 = vrot.slane %v182, %v186
  %v188 = vlaneseq
  %v189 = vshrl.u32 %v188, 7
  %v190 = vsub.s32 1, %v189
  %v191 = vrot.slane %v182, %v190
  %v192 = vlaneseq
  %v193 = vshrl.u32 %v192, 7
  %v194 = vsub.s32 2, %v193
  %v195 = vrot.slane %v182, %v194
  %v196 = vlaneseq
  %v197 = vshrl.u32 %v196, 7
  %v198 = vsub.s32 3, %v197
  %v199 = vrot.slane %v182, %v198
  %v204 = vmul.f32 %v180, %v187
  %v205 = vmul.f32 %v179, %v191
  %v206 = vmul.f32 %v178, %v195
  %v207 = vmul.f32 %v177, %v199
  %v212 = vrot.slane %v204, 4
  %v213 = vrot.slane %v205, 4
  %v214 = vrot.slane %v206, 4
  %v215 = vrot.slane %v207, 4
  %220 = vst [vmem:[#allocation2] sm:$0x30] %v212
  %221 = vst [vmem:[#allocation2 + $0x8] sm:$0x30] %v213
  %222 = vst [vmem:[#allocation2 + $0x10] sm:$0x30] %v214
  %223 = vst [vmem:[#allocation2 + $0x18] sm:$0x30] %v215
  %224 = vrot.lane.b32.xlu0 %v53, 1
  %v225 = vpop.permute.xlu0 %224
  %226 = vrot.lane.b32.xlu0 %v61, 1
  %v227 = vpop.permute.xlu0 %226
  %228 = vrot.lane.b32.xlu0 %v60, 1
  %v229 = vpop.permute.xlu0 %228
  %230 = vrot.lane.b32.xlu0 %v62, 1
  %v231 = vpop.permute.xlu0 %230
  %vm232 = vcmp.lt.s32.totalorder %v76, 1
  %v233 = vsel %vm232, %v229, %v231
  %v234 = vsel %vm232, %v227, %v229
  %v235 = vsel %vm232, %v225, %v227
  %v236 = vsel %vm232, %v231, %v225
  %s237 = scalar_lea.vmem %s8, 3
  %v238 = vld [vmem:[%s237] ss:$8 sm:$0xf]
  %v240 = vlaneseq
  %v241 = vshrl.u32 %v240, 7
  %v242 = vsub.s32 0, %v241
  %v243 = vrot.slane %v238, %v242
  %v244 = vlaneseq
  %v245 = vshrl.u32 %v244, 7
  %v246 = vsub.s32 1, %v245
  %v247 = vrot.slane %v238, %v246
  %v248 = vlaneseq
  %v249 = vshrl.u32 %v248, 7
  %v250 = vsub.s32 2, %v249
  %v251 = vrot.slane %v238, %v250
  %v252 = vlaneseq
  %v253 = vshrl.u32 %v252, 7
  %v254 = vsub.s32 3, %v253
  %v255 = vrot.slane %v238, %v254
  %v260 = vmul.f32 %v236, %v243
  %v261 = vmul.f32 %v235, %v247
  %v262 = vmul.f32 %v234, %v251
  %v263 = vmul.f32 %v233, %v255
  %v268 = vrot.slane %v260, 2
  %v269 = vrot.slane %v261, 2
  %v270 = vrot.slane %v262, 2
  %v271 = vrot.slane %v263, 2
  %276 = vst [vmem:[#allocation2] sm:$0xc0] %v268
  %277 = vst [vmem:[#allocation2 + $0x8] sm:$0xc0] %v269
  %278 = vst [vmem:[#allocation2 + $0x10] sm:$0xc0] %v270
  %279 = vst [vmem:[#allocation2 + $0x18] sm:$0xc0] %v271
  %280 = vst [vmem:[#allocation2 + $0x20] sm:$0x3] %v53
  %281 = vst [vmem:[#allocation2 + $0x28] sm:$0x3] %v61
  %282 = vst [vmem:[#allocation2 + $0x30] sm:$0x3] %v60
  %283 = vst [vmem:[#allocation2 + $0x38] sm:$0x3] %v62
  %284 = vrot.lane.b32.xlu0 %v53, 127
  %v285 = vpop.permute.xlu0 %284
  %286 = vrot.lane.b32.xlu0 %v61, 127
  %v287 = vpop.permute.xlu0 %286
  %288 = vrot.lane.b32.xlu0 %v60, 127
  %v289 = vpop.permute.xlu0 %288
  %290 = vrot.lane.b32.xlu0 %v62, 127
  %v291 = vpop.permute.xlu0 %290
  %vm292 = vcmp.lt.s32.totalorder %v76, 127
  %v293 = vsel %vm292, %v289, %v291
  %v294 = vsel %vm292, %v287, %v289
  %v295 = vsel %vm292, %v285, %v287
  %v296 = vsel %vm292, %v291, %v285
  %s297 = scalar_lea.vmem %s8, 5
  %v298 = vld [vmem:[%s297] ss:$8 sm:$0xf]
  %v300 = vlaneseq
  %v301 = vshrl.u32 %v300, 7
  %v302 = vsub.s32 0, %v301
  %v303 = vrot.slane %v298, %v302
  %v304 = vlaneseq
  %v305 = vshrl.u32 %v304, 7
  %v306 = vsub.s32 1, %v305
  %v307 = vrot.slane %v298, %v306
  %v308 = vlaneseq
  %v309 = vshrl.u32 %v308, 7
  %v310 = vsub.s32 2, %v309
  %v311 = vrot.slane %v298, %v310
  %v312 = vlaneseq
  %v313 = vshrl.u32 %v312, 7
  %v314 = vsub.s32 3, %v313
  %v315 = vrot.slane %v298, %v314
  %v320 = vmul.f32 %v295, %v303
  %v321 = vmul.f32 %v294, %v307
  %v322 = vmul.f32 %v293, %v311
  %v323 = vmul.f32 %v296, %v315
  %v328 = vrot.slane %v320, 6
  %v329 = vrot.slane %v321, 6
  %v330 = vrot.slane %v322, 6
  %v331 = vrot.slane %v323, 6
  %336 = vst [vmem:[#allocation2 + $0x20] sm:$0xc] %v328
  %337 = vst [vmem:[#allocation2 + $0x28] sm:$0xc] %v329
  %338 = vst [vmem:[#allocation2 + $0x30] sm:$0xc] %v330
  %339 = vst [vmem:[#allocation2 + $0x38] sm:$0xc] %v331
  %340 = vrot.lane.b32.xlu0 %v53, 113
  %v341 = vpop.permute.xlu0 %340
  %342 = vrot.lane.b32.xlu0 %v61, 113
  %v343 = vpop.permute.xlu0 %342
  %344 = vrot.lane.b32.xlu0 %v60, 113
  %v345 = vpop.permute.xlu0 %344
  %346 = vrot.lane.b32.xlu0 %v62, 113
  %v347 = vpop.permute.xlu0 %346
  %vm348 = vcmp.lt.s32.totalorder %v76, 113
  %v349 = vsel %vm348, %v345, %v347
  %v350 = vsel %vm348, %v343, %v345
  %v351 = vsel %vm348, %v341, %v343
  %v352 = vsel %vm348, %v347, %v341
  %s353 = scalar_lea.vmem %s8, 6
  %v354 = vld [vmem:[%s353] ss:$8 sm:$0xf]
  %v356 = vlaneseq
  %v357 = vshrl.u32 %v356, 7
  %v358 = vsub.s32 0, %v357
  %v359 = vrot.slane %v354, %v358
  %v360 = vlaneseq
  %v361 = vshrl.u32 %v360, 7
  %v362 = vsub.s32 1, %v361
  %v363 = vrot.slane %v354, %v362
  %v364 = vlaneseq
  %v365 = vshrl.u32 %v364, 7
  %v366 = vsub.s32 2, %v365
  %v367 = vrot.slane %v354, %v366
  %v368 = vlaneseq
  %v369 = vshrl.u32 %v368, 7
  %v370 = vsub.s32 3, %v369
  %v371 = vrot.slane %v354, %v370
  %v376 = vmul.f32 %v351, %v359
  %v377 = vmul.f32 %v350, %v363
  %v378 = vmul.f32 %v349, %v367
  %v379 = vmul.f32 %v352, %v371
  %v384 = vrot.slane %v376, 4
  %v385 = vrot.slane %v377, 4
  %v386 = vrot.slane %v378, 4
  %v387 = vrot.slane %v379, 4
  %392 = vst [vmem:[#allocation2 + $0x20] sm:$0x30] %v384
  %393 = vst [vmem:[#allocation2 + $0x28] sm:$0x30] %v385
  %394 = vst [vmem:[#allocation2 + $0x30] sm:$0x30] %v386
  %395 = vst [vmem:[#allocation2 + $0x38] sm:$0x30] %v387
  %396 = vrot.lane.b32.xlu0 %v53, 112
  %v397 = vpop.permute.xlu0 %396
  %398 = vrot.lane.b32.xlu0 %v61, 112
  %v399 = vpop.permute.xlu0 %398
  %400 = vrot.lane.b32.xlu0 %v60, 112
  %v401 = vpop.permute.xlu0 %400
  %402 = vrot.lane.b32.xlu0 %v62, 112
  %v403 = vpop.permute.xlu0 %402
  %vm404 = vcmp.lt.s32.totalorder %v76, 112
  %v405 = vsel %vm404, %v401, %v403
  %v406 = vsel %vm404, %v399, %v401
  %v407 = vsel %vm404, %v397, %v399
  %v408 = vsel %vm404, %v403, %v397
  %s409 = scalar_lea.vmem %s8, 7
  %v410 = vld [vmem:[%s409] ss:$8 sm:$0xf]
  %v412 = vlaneseq
  %v413 = vshrl.u32 %v412, 7
  %v414 = vsub.s32 0, %v413
  %v415 = vrot.slane %v410, %v414
  %v416 = vlaneseq
  %v417 = vshrl.u32 %v416, 7
  %v418 = vsub.s32 1, %v417
  %v419 = vrot.slane %v410, %v418
  %v420 = vlaneseq
  %v421 = vshrl.u32 %v420, 7
  %v422 = vsub.s32 2, %v421
  %v423 = vrot.slane %v410, %v422
  %v424 = vlaneseq
  %v425 = vshrl.u32 %v424, 7
  %v426 = vsub.s32 3, %v425
  %v427 = vrot.slane %v410, %v426
  %v432 = vmul.f32 %v407, %v415
  %v433 = vmul.f32 %v406, %v419
  %v434 = vmul.f32 %v405, %v423
  %v435 = vmul.f32 %v408, %v427
  %v440 = vrot.slane %v432, 2
  %v441 = vrot.slane %v433, 2
  %v442 = vrot.slane %v434, 2
  %v443 = vrot.slane %v435, 2
  %448 = vst [vmem:[#allocation2 + $0x20] sm:$0xc0] %v440
  %449 = vst [vmem:[#allocation2 + $0x28] sm:$0xc0] %v441
  %450 = vst [vmem:[#allocation2 + $0x30] sm:$0xc0] %v442
  %451 = vst [vmem:[#allocation2 + $0x38] sm:$0xc0] %v443
  %452 = vrot.lane.b32.xlu0 %v53, 111
  %v453 = vpop.permute.xlu0 %452
  %454 = vrot.lane.b32.xlu0 %v61, 111
  %v455 = vpop.permute.xlu0 %454
  %456 = vrot.lane.b32.xlu0 %v60, 111
  %v457 = vpop.permute.xlu0 %456
  %458 = vrot.lane.b32.xlu0 %v62, 111
  %v459 = vpop.permute.xlu0 %458
  %vm460 = vcmp.lt.s32.totalorder %v76, 111
  %v461 = vsel %vm460, %v457, %v459
  %v462 = vsel %vm460, %v455, %v457
  %v463 = vsel %vm460, %v453, %v455
  %v464 = vsel %vm460, %v459, %v453
  %s465 = scalar_lea.vmem %s8, 32
  %v466 = vld [vmem:[%s465] ss:$8 sm:$0xf]
  %v468 = vlaneseq
  %v469 = vshrl.u32 %v468, 7
  %v470 = vsub.s32 0, %v469
  %v471 = vrot.slane %v466, %v470
  %v472 = vlaneseq
  %v473 = vshrl.u32 %v472, 7
  %v474 = vsub.s32 1, %v473
  %v475 = vrot.slane %v466, %v474
  %v476 = vlaneseq
  %v477 = vshrl.u32 %v476, 7
  %v478 = vsub.s32 2, %v477
  %v479 = vrot.slane %v466, %v478
  %v480 = vlaneseq
  %v481 = vshrl.u32 %v480, 7
  %v482 = vsub.s32 3, %v481
  %v483 = vrot.slane %v466, %v482
  %v488 = vmul.f32 %v463, %v471
  %v489 = vmul.f32 %v462, %v475
  %v490 = vmul.f32 %v461, %v479
  %v491 = vmul.f32 %v464, %v483
  %492 = vst [vmem:[#allocation2 + $0x40] sm:$0x3] %v488
  %493 = vst [vmem:[#allocation2 + $0x48] sm:$0x3] %v489
  %494 = vst [vmem:[#allocation2 + $0x50] sm:$0x3] %v490
  %495 = vst [vmem:[#allocation2 + $0x58] sm:$0x3] %v491
  %v496 = vld [vmem:[%s1] sm:$0xff]
  %v497 = vld [vmem:[#allocation2] sm:$0xff]
  %v498 = vld [vmem:[#allocation2 + $0x8] sm:$0xff]
  %v499 = vld [vmem:[#allocation2 + $0x10] sm:$0xff]
  %v500 = vld [vmem:[#allocation2 + $0x18] sm:$0xff]
  %v501 = vld [vmem:[#allocation2 + $0x20] sm:$0xff]
  %v502 = vld [vmem:[#allocation2 + $0x28] sm:$0xff]
  %v503 = vld [vmem:[#allocation2 + $0x30] sm:$0xff]
  %v504 = vld [vmem:[#allocation2 + $0x38] sm:$0xff]
  %v505 = vld [vmem:[#allocation2 + $0x40] sm:$0x3]
  %v506 = vld [vmem:[#allocation2 + $0x48] sm:$0x3]
  %v507 = vld [vmem:[#allocation2 + $0x50] sm:$0x3]
  %v508 = vld [vmem:[#allocation2 + $0x58] sm:$0x3]
  %v509 = vld [vmem:[%s2] sm:$0xff]
  %511 = vset.pattern.permute.xlu0 0
  %512 = vperm.xlu0 %511, %v509
  %v513 = vpop.permute.xlu0 %512
  %vm515 = vcmask 146432
  %v517 = vsel %vm515, %v496, 0
  %vm519 = vcmask 1041408
  %v521 = vsel %vm519, %v505, 0
  %v524 = vsel %vm519, %v506, 0
  %v527 = vsel %vm519, %v507, 0
  %v530 = vsel %vm519, %v508, 0
  %532 = vmatprep.subr.mxu0 %v498
  %533 = vmatpush1.msra.mxu0 %v497
  %534 = vmatprep.subr.mxu0 %v502
  %535 = vmatpush1.msra.mxu0 %v501
  %536 = vmatprep.subr.mxu0 %v524
  %537 = vmatpush1.msra.mxu0 %v521
  %538 = vmatprep.subr.mxu0 0.0
  %539 = vmatpush1.msra.mxu0 0.0
  %540 = vmatprep.subr.mxu0 0.0
  %541 = vmatpush1.msra.mxu0 0.0
  %542 = vmatprep.subr.mxu0 0.0
  %543 = vmatpush1.msra.mxu0 0.0
  %544 = vmatprep.subr.mxu0 0.0
  %545 = vmatpush1.msra.mxu0 0.0
  %546 = vmatprep.subr.mxu0 0.0
  %547 = vmatpush1.msra.mxu0 0.0
  %548 = vmatprep.subr.mxu0 0.0
  %549 = vmatpush1.msra.mxu0 0.0
  %550 = vmatprep.subr.mxu0 0.0
  %551 = vmatpush1.msra.mxu0 0.0
  %552 = vmatprep.subr.mxu0 0.0
  %553 = vmatpush1.msra.mxu0 0.0
  %554 = vmatprep.subr.mxu0 0.0
  %555 = vmatpush1.msra.mxu0 0.0
  %556 = vmatprep.subr.mxu0 0.0
  %557 = vmatpush1.msra.mxu0 0.0
  %558 = vmatprep.subr.mxu0 0.0
  %559 = vmatpush1.msra.mxu0 0.0
  %560 = vmatprep.subr.mxu0 0.0
  %561 = vmatpush1.msra.mxu0 0.0
  %562 = vmatprep.subr.mxu0 0.0
  %563 = vmatpush1.msra.mxu0 0.0
  %564 = vmatprep.subr.mxu0 0.0
  %565 = vmatpush1.msra.mxu0 0.0
  %566 = vmatprep.subr.mxu0 0.0
  %567 = vmatpush1.msra.mxu0 0.0
  %568 = vmatprep.subr.mxu0 0.0
  %569 = vmatpush1.msra.mxu0 0.0
  %570 = vmatprep.subr.mxu0 0.0
  %571 = vmatpush1.msra.mxu0 0.0
  %572 = vmatprep.subr.mxu0 0.0
  %573 = vmatpush1.msra.mxu0 0.0
  %574 = vmatprep.subr.mxu0 0.0
  %575 = vmatpush1.msra.mxu0 0.0
  %576 = vmatprep.subr.mxu0 0.0
  %577 = vmatpush1.msra.mxu0 0.0
  %578 = vmatprep.subr.mxu0 0.0
  %579 = vmatpush1.msra.mxu0 0.0
  %580 = vmatprep.subr.mxu0 0.0
  %581 = vmatpush1.msra.mxu0 0.0
  %582 = vmatprep.subr.mxu0 0.0
  %583 = vmatpush1.msra.mxu0 0.0
  %584 = vmatprep.subr.mxu0 0.0
  %585 = vmatpush1.msra.mxu0 0.0
  %586 = vmatprep.subr.mxu0 0.0
  %587 = vmatpush1.msra.mxu0 0.0
  %588 = vmatprep.subr.mxu0 0.0
  %589 = vmatpush1.msra.mxu0 0.0
  %590 = vmatprep.subr.mxu0 0.0
  %591 = vmatpush1.msra.mxu0 0.0
  %592 = vmatprep.subr.mxu0 0.0
  %593 = vmatpush1.msra.mxu0 0.0
  %594 = vmatprep.subr.mxu0 0.0
  %595 = vmatpush1.msra.mxu0 0.0
  %596 = vmatprep.mubr.f32.mxu0 0.0
  %597 = vmatmul.mubr.f32.gmra.mrb[0].mxu0 %v517
  %v598 = vpop.f32.mrb[0].mxu0
  %v599 = vadd.f32 %v513, %v598
  %v600 = vpop.f32.mrb[0].mxu0
  %v601 = vadd.f32 %v513, %v600
  %602 = vdwg.mxu0
  %603 = vmatprep.subr.mxu0 %v500
  %604 = vmatpush1.msra.mxu0 %v499
  %605 = vmatprep.subr.mxu0 %v504
  %606 = vmatpush1.msra.mxu0 %v503
  %607 = vmatprep.subr.mxu0 %v530
  %608 = vmatpush1.msra.mxu0 %v527
  %609 = vmatprep.subr.mxu0 0.0
  %610 = vmatpush1.msra.mxu0 0.0
  %611 = vmatprep.subr.mxu0 0.0
  %612 = vmatpush1.msra.mxu0 0.0
  %613 = vmatprep.subr.mxu0 0.0
  %614 = vmatpush1.msra.mxu0 0.0
  %615 = vmatprep.subr.mxu0 0.0
  %616 = vmatpush1.msra.mxu0 0.0
  %617 = vmatprep.subr.mxu0 0.0
  %618 = vmatpush1.msra.mxu0 0.0
  %619 = vmatprep.subr.mxu0 0.0
  %620 = vmatpush1.msra.mxu0 0.0
  %621 = vmatprep.subr.mxu0 0.0
  %622 = vmatpush1.msra.mxu0 0.0
  %623 = vmatprep.subr.mxu0 0.0
  %624 = vmatpush1.msra.mxu0 0.0
  %625 = vmatprep.subr.mxu0 0.0
  %626 = vmatpush1.msra.mxu0 0.0
  %627 = vmatprep.subr.mxu0 0.0
  %628 = vmatpush1.msra.mxu0 0.0
  %629 = vmatprep.subr.mxu0 0.0
  %630 = vmatpush1.msra.mxu0 0.0
  %631 = vmatprep.subr.mxu0 0.0
  %632 = vmatpush1.msra.mxu0 0.0
  %633 = vmatprep.subr.mxu0 0.0
  %634 = vmatpush1.msra.mxu0 0.0
  %635 = vmatprep.subr.mxu0 0.0
  %636 = vmatpush1.msra.mxu0 0.0
  %637 = vmatprep.subr.mxu0 0.0
  %638 = vmatpush1.msra.mxu0 0.0
  %639 = vmatprep.subr.mxu0 0.0
  %640 = vmatpush1.msra.mxu0 0.0
  %641 = vmatprep.subr.mxu0 0.0
  %642 = vmatpush1.msra.mxu0 0.0
  %643 = vmatprep.subr.mxu0 0.0
  %644 = vmatpush1.msra.mxu0 0.0
  %645 = vmatprep.subr.mxu0 0.0
  %646 = vmatpush1.msra.mxu0 0.0
  %647 = vmatprep.subr.mxu0 0.0
  %648 = vmatpush1.msra.mxu0 0.0
  %649 = vmatprep.subr.mxu0 0.0
  %650 = vmatpush1.msra.mxu0 0.0
  %651 = vmatprep.subr.mxu0 0.0
  %652 = vmatpush1.msra.mxu0 0.0
  %653 = vmatprep.subr.mxu0 0.0
  %654 = vmatpush1.msra.mxu0 0.0
  %655 = vmatprep.subr.mxu0 0.0
  %656 = vmatpush1.msra.mxu0 0.0
  %657 = vmatprep.subr.mxu0 0.0
  %658 = vmatpush1.msra.mxu0 0.0
  %659 = vmatprep.subr.mxu0 0.0
  %660 = vmatpush1.msra.mxu0 0.0
  %661 = vmatprep.subr.mxu0 0.0
  %662 = vmatpush1.msra.mxu0 0.0
  %663 = vmatprep.subr.mxu0 0.0
  %664 = vmatpush1.msra.mxu0 0.0
  %665 = vmatprep.subr.mxu0 0.0
  %666 = vmatpush1.msra.mxu0 0.0
  %667 = vmatprep.mubr.f32.mxu0 0.0
  %668 = vmatmul.mubr.f32.gmra.mrb[0].mxu0 %v517
  %v669 = vpop.f32.mrb[0].mxu0
  %v670 = vadd.f32 %v513, %v669
  %v671 = vpop.f32.mrb[0].mxu0
  %v672 = vadd.f32 %v513, %v671
  %673 = vdwg.mxu0
  %v674 = vmax.f32 %v599, 0.0
  %v675 = vmax.f32 %v601, 0.0
  %v676 = vmax.f32 %v670, 0.0
  %v677 = vmax.f32 %v672, 0.0
  %v678 = vld [vmem:[%s3] sm:$0xff]
  %v679 = vld [vmem:[%s4] sm:$0xff]
  %681 = vset.pattern.permute.xlu0 0
  %682 = vperm.xlu0 %681, %v679
  %v683 = vpop.permute.xlu0 %682
  %vm685 = vcmask 64512
  %v687 = vsel %vm685, %v678, 0
  %689 = vmatprep.subr.mxu0 %v675
  %690 = vmatpush1.msra.mxu0 %v674
  %691 = vmatprep.subr.mxu0 0.0
  %692 = vmatpush1.msra.mxu0 0.0
  %693 = vmatprep.subr.mxu0 0.0
  %694 = vmatpush1.msra.mxu0 0.0
  %695 = vmatprep.subr.mxu0 0.0
  %696 = vmatpush1.msra.mxu0 0.0
  %697 = vmatprep.subr.mxu0 0.0
  %698 = vmatpush1.msra.mxu0 0.0
  %699 = vmatprep.subr.mxu0 0.0
  %700 = vmatpush1.msra.mxu0 0.0
  %701 = vmatprep.subr.mxu0 0.0
  %702 = vmatpush1.msra.mxu0 0.0
  %703 = vmatprep.subr.mxu0 0.0
  %704 = vmatpush1.msra.mxu0 0.0
  %705 = vmatprep.subr.mxu0 0.0
  %706 = vmatpush1.msra.mxu0 0.0
  %707 = vmatprep.subr.mxu0 0.0
  %708 = vmatpush1.msra.mxu0 0.0
  %709 = vmatprep.subr.mxu0 0.0
  %710 = vmatpush1.msra.mxu0 0.0
  %711 = vmatprep.subr.mxu0 0.0
  %712 = vmatpush1.msra.mxu0 0.0
  %713 = vmatprep.subr.mxu0 0.0
  %714 = vmatpush1.msra.mxu0 0.0
  %715 = vmatprep.subr.mxu0 0.0
  %716 = vmatpush1.msra.mxu0 0.0
  %717 = vmatprep.subr.mxu0 0.0
  %718 = vmatpush1.msra.mxu0 0.0
  %719 = vmatprep.subr.mxu0 0.0
  %720 = vmatpush1.msra.mxu0 0.0
  %721 = vmatprep.subr.mxu0 0.0
  %722 = vmatpush1.msra.mxu0 0.0
  %723 = vmatprep.subr.mxu0 0.0
  %724 = vmatpush1.msra.mxu0 0.0
  %725 = vmatprep.subr.mxu0 0.0
  %726 = vmatpush1.msra.mxu0 0.0
  %727 = vmatprep.subr.mxu0 0.0
  %728 = vmatpush1.msra.mxu0 0.0
  %729 = vmatprep.subr.mxu0 0.0
  %730 = vmatpush1.msra.mxu0 0.0
  %731 = vmatprep.subr.mxu0 0.0
  %732 = vmatpush1.msra.mxu0 0.0
  %733 = vmatprep.subr.mxu0 0.0
  %734 = vmatpush1.msra.mxu0 0.0
  %735 = vmatprep.subr.mxu0 0.0
  %736 = vmatpush1.msra.mxu0 0.0
  %737 = vmatprep.subr.mxu0 0.0
  %738 = vmatpush1.msra.mxu0 0.0
  %739 = vmatprep.subr.mxu0 0.0
  %740 = vmatpush1.msra.mxu0 0.0
  %741 = vmatprep.subr.mxu0 0.0
  %742 = vmatpush1.msra.mxu0 0.0
  %743 = vmatprep.subr.mxu0 0.0
  %744 = vmatpush1.msra.mxu0 0.0
  %745 = vmatprep.subr.mxu0 0.0
  %746 = vmatpush1.msra.mxu0 0.0
  %747 = vmatprep.subr.mxu0 0.0
  %748 = vmatpush1.msra.mxu0 0.0
  %749 = vmatprep.subr.mxu0 0.0
  %750 = vmatpush1.msra.mxu0 0.0
  %751 = vmatprep.subr.mxu0 0.0
  %752 = vmatpush1.msra.mxu0 0.0
  %753 = vmatprep.mubr.f32.mxu0 0.0
  %754 = vmatmul.mubr.f32.gmra.mrb[0].mxu0 %v687
  %v755 = vpop.f32.mrb[0].mxu0
  %v756 = vadd.f32 %v683, %v755
  %v757 = vpop.f32.mrb[0].mxu0
  %v758 = vadd.f32 %v683, %v757
  %759 = vdwg.mxu0
  %760 = vmatprep.subr.mxu0 %v677
  %761 = vmatpush1.msra.mxu0 %v676
  %762 = vmatprep.subr.mxu0 0.0
  %763 = vmatpush1.msra.mxu0 0.0
  %764 = vmatprep.subr.mxu0 0.0
  %765 = vmatpush1.msra.mxu0 0.0
  %766 = vmatprep.subr.mxu0 0.0
  %767 = vmatpush1.msra.mxu0 0.0
  %768 = vmatprep.subr.mxu0 0.0
  %769 = vmatpush1.msra.mxu0 0.0
  %770 = vmatprep.subr.mxu0 0.0
  %771 = vmatpush1.msra.mxu0 0.0
  %772 = vmatprep.subr.mxu0 0.0
  %773 = vmatpush1.msra.mxu0 0.0
  %774 = vmatprep.subr.mxu0 0.0
  %775 = vmatpush1.msra.mxu0 0.0
  %776 = vmatprep.subr.mxu0 0.0
  %777 = vmatpush1.msra.mxu0 0.0
  %778 = vmatprep.subr.mxu0 0.0
  %779 = vmatpush1.msra.mxu0 0.0
  %780 = vmatprep.subr.mxu0 0.0
  %781 = vmatpush1.msra.mxu0 0.0
  %782 = vmatprep.subr.mxu0 0.0
  %783 = vmatpush1.msra.mxu0 0.0
  %784 = vmatprep.subr.mxu0 0.0
  %785 = vmatpush1.msra.mxu0 0.0
  %786 = vmatprep.subr.mxu0 0.0
  %787 = vmatpush1.msra.mxu0 0.0
  %788 = vmatprep.subr.mxu0 0.0
  %789 = vmatpush1.msra.mxu0 0.0
  %790 = vmatprep.subr.mxu0 0.0
  %791 = vmatpush1.msra.mxu0 0.0
  %792 = vmatprep.subr.mxu0 0.0
  %793 = vmatpush1.msra.mxu0 0.0
  %794 = vmatprep.subr.mxu0 0.0
  %795 = vmatpush1.msra.mxu0 0.0
  %796 = vmatprep.subr.mxu0 0.0
  %797 = vmatpush1.msra.mxu0 0.0
  %798 = vmatprep.subr.mxu0 0.0
  %799 = vmatpush1.msra.mxu0 0.0
  %800 = vmatprep.subr.mxu0 0.0
  %801 = vmatpush1.msra.mxu0 0.0
  %802 = vmatprep.subr.mxu0 0.0
  %803 = vmatpush1.msra.mxu0 0.0
  %804 = vmatprep.subr.mxu0 0.0
  %805 = vmatpush1.msra.mxu0 0.0
  %806 = vmatprep.subr.mxu0 0.0
  %807 = vmatpush1.msra.mxu0 0.0
  %808 = vmatprep.subr.mxu0 0.0
  %809 = vmatpush1.msra.mxu0 0.0
  %810 = vmatprep.subr.mxu0 0.0
  %811 = vmatpush1.msra.mxu0 0.0
  %812 = vmatprep.subr.mxu0 0.0
  %813 = vmatpush1.msra.mxu0 0.0
  %814 = vmatprep.subr.mxu0 0.0
  %815 = vmatpush1.msra.mxu0 0.0
  %816 = vmatprep.subr.mxu0 0.0
  %817 = vmatpush1.msra.mxu0 0.0
  %818 = vmatprep.subr.mxu0 0.0
  %819 = vmatpush1.msra.mxu0 0.0
  %820 = vmatprep.subr.mxu0 0.0
  %821 = vmatpush1.msra.mxu0 0.0
  %822 = vmatprep.subr.mxu0 0.0
  %823 = vmatpush1.msra.mxu0 0.0
  %824 = vmatprep.mubr.f32.mxu0 0.0
  %825 = vmatmul.mubr.f32.gmra.mrb[0].mxu0 %v687
  %v826 = vpop.f32.mrb[0].mxu0
  %v827 = vadd.f32 %v683, %v826
  %v828 = vpop.f32.mrb[0].mxu0
  %v829 = vadd.f32 %v683, %v828
  %830 = vdwg.mxu0
  %v831 = vmax.f32 %v756, 0.0
  %v832 = vmax.f32 %v758, 0.0
  %v833 = vmax.f32 %v827, 0.0
  %v834 = vmax.f32 %v829, 0.0
  %835 = vrot.lane.b32.xlu0 %v831, 17
  %v836 = vpop.permute.xlu0 %835
  %837 = vrot.lane.b32.xlu0 %v832, 17
  %v838 = vpop.permute.xlu0 %837
  %839 = vrot.lane.b32.xlu0 %v833, 17
  %v840 = vpop.permute.xlu0 %839
  %841 = vrot.lane.b32.xlu0 %v834, 17
  %v842 = vpop.permute.xlu0 %841
  %v843 = vsel %vm77, %v840, %v842
  %v844 = vsel %vm77, %v838, %v840
  %v845 = vsel %vm77, %v836, %v838
  %v846 = vsel %vm77, %v842, %v836
  %v847 = vld [vmem:[%s8] ss:$8 sm:$0xf]
  %v849 = vlaneseq
  %v850 = vshrl.u32 %v849, 7
  %v851 = vsub.s32 0, %v850
  %v852 = vrot.slane %v847, %v851
  %v853 = vlaneseq
  %v854 = vshrl.u32 %v853, 7
  %v855 = vsub.s32 1, %v854
  %v856 = vrot.slane %v847, %v855
  %v857 = vlaneseq
  %v858 = vshrl.u32 %v857, 7
  %v859 = vsub.s32 2, %v858
  %v860 = vrot.slane %v847, %v859
  %v861 = vlaneseq
  %v862 = vshrl.u32 %v861, 7
  %v863 = vsub.s32 3, %v862
  %v864 = vrot.slane %v847, %v863
  %v869 = vmul.f32 %v846, %v852
  %v870 = vmul.f32 %v845, %v856
  %v871 = vmul.f32 %v844, %v860
  %v872 = vmul.f32 %v843, %v864
  %v873 = vsub.f32 1.0, %v847
  %v875 = vlaneseq
  %v876 = vshrl.u32 %v875, 7
  %v877 = vsub.s32 0, %v876
  %v878 = vrot.slane %v873, %v877
  %v879 = vlaneseq
  %v880 = vshrl.u32 %v879, 7
  %v881 = vsub.s32 1, %v880
  %v882 = vrot.slane %v873, %v881
  %v883 = vlaneseq
  %v884 = vshrl.u32 %v883, 7
  %v885 = vsub.s32 2, %v884
  %v886 = vrot.slane %v873, %v885
  %v887 = vlaneseq
  %v888 = vshrl.u32 %v887, 7
  %v889 = vsub.s32 3, %v888
  %v890 = vrot.slane %v873, %v889
  %v895 = vadd.f32 %v869, %v878
  %v896 = vadd.f32 %v870, %v882
  %v897 = vadd.f32 %v871, %v886
  %v898 = vadd.f32 %v872, %v890
  %899 = vst [vmem:[#allocation3] sm:$0xff] %v895
  %900 = vst [vmem:[#allocation3 + $0x8] sm:$0xff] %v896
  %901 = vst [vmem:[#allocation3 + $0x10] sm:$0xff] %v897
  %902 = vst [vmem:[#allocation3 + $0x18] sm:$0xff] %v898
  %903 = vrot.lane.b32.xlu0 %v831, 16
  %v904 = vpop.permute.xlu0 %903
  %905 = vrot.lane.b32.xlu0 %v832, 16
  %v906 = vpop.permute.xlu0 %905
  %907 = vrot.lane.b32.xlu0 %v833, 16
  %v908 = vpop.permute.xlu0 %907
  %909 = vrot.lane.b32.xlu0 %v834, 16
  %v910 = vpop.permute.xlu0 %909
  %v911 = vsel %vm120, %v908, %v910
  %v912 = vsel %vm120, %v906, %v908
  %v913 = vsel %vm120, %v904, %v906
  %v914 = vsel %vm120, %v910, %v904
  %v915 = vld [vmem:[%s125] ss:$8 sm:$0xf]
  %v917 = vlaneseq
  %v918 = vshrl.u32 %v917, 7
  %v919 = vsub.s32 0, %v918
  %v920 = vrot.slane %v915, %v919
  %v921 = vlaneseq
  %v922 = vshrl.u32 %v921, 7
  %v923 = vsub.s32 1, %v922
  %v924 = vrot.slane %v915, %v923
  %v925 = vlaneseq
  %v926 = vshrl.u32 %v925, 7
  %v927 = vsub.s32 2, %v926
  %v928 = vrot.slane %v915, %v927
  %v929 = vlaneseq
  %v930 = vshrl.u32 %v929, 7
  %v931 = vsub.s32 3, %v930
  %v932 = vrot.slane %v915, %v931
  %v937 = vmul.f32 %v914, %v920
  %v938 = vmul.f32 %v913, %v924
  %v939 = vmul.f32 %v912, %v928
  %v940 = vmul.f32 %v911, %v932
  %v941 = vsub.f32 1.0, %v915
  %v943 = vlaneseq
  %v944 = vshrl.u32 %v943, 7
  %v945 = vsub.s32 0, %v944
  %v946 = vrot.slane %v941, %v945
  %v947 = vlaneseq
  %v948 = vshrl.u32 %v947, 7
  %v949 = vsub.s32 1, %v948
  %v950 = vrot.slane %v941, %v949
  %v951 = vlaneseq
  %v952 = vshrl.u32 %v951, 7
  %v953 = vsub.s32 2, %v952
  %v954 = vrot.slane %v941, %v953
  %v955 = vlaneseq
  %v956 = vshrl.u32 %v955, 7
  %v957 = vsub.s32 3, %v956
  %v958 = vrot.slane %v941, %v957
  %v963 = vadd.f32 %v937, %v946
  %v964 = vadd.f32 %v938, %v950
  %v965 = vadd.f32 %v939, %v954
  %v966 = vadd.f32 %v940, %v958
  %967 = vst [vmem:[#allocation3 + $0x20] sm:$0xff] %v963
  %968 = vst [vmem:[#allocation3 + $0x28] sm:$0xff] %v964
  %969 = vst [vmem:[#allocation3 + $0x30] sm:$0xff] %v965
  %970 = vst [vmem:[#allocation3 + $0x38] sm:$0xff] %v966
  %971 = vrot.lane.b32.xlu0 %v831, 15
  %v972 = vpop.permute.xlu0 %971
  %973 = vrot.lane.b32.xlu0 %v832, 15
  %v974 = vpop.permute.xlu0 %973
  %975 = vrot.lane.b32.xlu0 %v833, 15
  %v976 = vpop.permute.xlu0 %975
  %977 = vrot.lane.b32.xlu0 %v834, 15
  %v978 = vpop.permute.xlu0 %977
  %v979 = vsel %vm176, %v976, %v978
  %v980 = vsel %vm176, %v974, %v976
  %v981 = vsel %vm176, %v972, %v974
  %v982 = vsel %vm176, %v978, %v972
  %v983 = vld [vmem:[%s181] ss:$8 sm:$0xf]
  %v985 = vlaneseq
  %v986 = vshrl.u32 %v985, 7
  %v987 = vsub.s32 0, %v986
  %v988 = vrot.slane %v983, %v987
  %v989 = vlaneseq
  %v990 = vshrl.u32 %v989, 7
  %v991 = vsub.s32 1, %v990
  %v992 = vrot.slane %v983, %v991
  %v993 = vlaneseq
  %v994 = vshrl.u32 %v993, 7
  %v995 = vsub.s32 2, %v994
  %v996 = vrot.slane %v983, %v995
  %v997 = vlaneseq
  %v998 = vshrl.u32 %v997, 7
  %v999 = vsub.s32 3, %v998
  %v1000 = vrot.slane %v983, %v999
  %v1005 = vmul.f32 %v982, %v988
  %v1006 = vmul.f32 %v981, %v992
  %v1007 = vmul.f32 %v980, %v996
  %v1008 = vmul.f32 %v979, %v1000
  %v1009 = vsub.f32 1.0, %v983
  %v1011 = vlaneseq
  %v1012 = vshrl.u32 %v1011, 7
  %v1013 = vsub.s32 0, %v1012
  %v1014 = vrot.slane %v1009, %v1013
  %v1015 = vlaneseq
  %v1016 = vshrl.u32 %v1015, 7
  %v1017 = vsub.s32 1, %v1016
  %v1018 = vrot.slane %v1009, %v1017
  %v1019 = vlaneseq
  %v1020 = vshrl.u32 %v1019, 7
  %v1021 = vsub.s32 2, %v1020
  %v1022 = vrot.slane %v1009, %v1021
  %v1023 = vlaneseq
  %v1024 = vshrl.u32 %v1023, 7
  %v1025 = vsub.s32 3, %v1024
  %v1026 = vrot.slane %v1009, %v1025
  %v1031 = vadd.f32 %v1005, %v1014
  %v1032 = vadd.f32 %v1006, %v1018
  %v1033 = vadd.f32 %v1007, %v1022
  %v1034 = vadd.f32 %v1008, %v1026
  %1035 = vst [vmem:[#allocation3 + $0x40] sm:$0xff] %v1031
  %1036 = vst [vmem:[#allocation3 + $0x48] sm:$0xff] %v1032
  %1037 = vst [vmem:[#allocation3 + $0x50] sm:$0xff] %v1033
  %1038 = vst [vmem:[#allocation3 + $0x58] sm:$0xff] %v1034
  %1039 = vrot.lane.b32.xlu0 %v831, 1
  %v1040 = vpop.permute.xlu0 %1039
  %1041 = vrot.lane.b32.xlu0 %v832, 1
  %v1042 = vpop.permute.xlu0 %1041
  %1043 = vrot.lane.b32.xlu0 %v833, 1
  %v1044 = vpop.permute.xlu0 %1043
  %1045 = vrot.lane.b32.xlu0 %v834, 1
  %v1046 = vpop.permute.xlu0 %1045
  %v1047 = vsel %vm232, %v1044, %v1046
  %v1048 = vsel %vm232, %v1042, %v1044
  %v1049 = vsel %vm232, %v1040, %v1042
  %v1050 = vsel %vm232, %v1046, %v1040
  %v1051 = vld [vmem:[%s237] ss:$8 sm:$0xf]
  %v1053 = vlaneseq
  %v1054 = vshrl.u32 %v1053, 7
  %v1055 = vsub.s32 0, %v1054
  %v1056 = vrot.slane %v1051, %v1055
  %v1057 = vlaneseq
  %v1058 = vshrl.u32 %v1057, 7
  %v1059 = vsub.s32 1, %v1058
  %v1060 = vrot.slane %v1051, %v1059
  %v1061 = vlaneseq
  %v1062 = vshrl.u32 %v1061, 7
  %v1063 = vsub.s32 2, %v1062
  %v1064 = vrot.slane %v1051, %v1063
  %v1065 = vlaneseq
  %v1066 = vshrl.u32 %v1065, 7
  %v1067 = vsub.s32 3, %v1066
  %v1068 = vrot.slane %v1051, %v1067
  %v1073 = vmul.f32 %v1050, %v1056
  %v1074 = vmul.f32 %v1049, %v1060
  %v1075 = vmul.f32 %v1048, %v1064
  %v1076 = vmul.f32 %v1047, %v1068
  %v1077 = vsub.f32 1.0, %v1051
  %v1079 = vlaneseq
  %v1080 = vshrl.u32 %v1079, 7
  %v1081 = vsub.s32 0, %v1080
  %v1082 = vrot.slane %v1077, %v1081
  %v1083 = vlaneseq
  %v1084 = vshrl.u32 %v1083, 7
  %v1085 = vsub.s32 1, %v1084
  %v1086 = vrot.slane %v1077, %v1085
  %v1087 = vlaneseq
  %v1088 = vshrl.u32 %v1087, 7
  %v1089 = vsub.s32 2, %v1088
  %v1090 = vrot.slane %v1077, %v1089
  %v1091 = vlaneseq
  %v1092 = vshrl.u32 %v1091, 7
  %v1093 = vsub.s32 3, %v1092
  %v1094 = vrot.slane %v1077, %v1093
  %v1099 = vadd.f32 %v1073, %v1082
  %v1100 = vadd.f32 %v1074, %v1086
  %v1101 = vadd.f32 %v1075, %v1090
  %v1102 = vadd.f32 %v1076, %v1094
  %1103 = vst [vmem:[#allocation3 + $0x60] sm:$0xff] %v1099
  %1104 = vst [vmem:[#allocation3 + $0x68] sm:$0xff] %v1100
  %1105 = vst [vmem:[#allocation3 + $0x70] sm:$0xff] %v1101
  %1106 = vst [vmem:[#allocation3 + $0x78] sm:$0xff] %v1102
  %s1107 = scalar_lea.vmem %s8, 4
  %v1108 = vld [vmem:[%s1107] ss:$8 sm:$0xf]
  %v1110 = vlaneseq
  %v1111 = vshrl.u32 %v1110, 7
  %v1112 = vsub.s32 0, %v1111
  %v1113 = vrot.slane %v1108, %v1112
  %v1114 = vlaneseq
  %v1115 = vshrl.u32 %v1114, 7
  %v1116 = vsub.s32 1, %v1115
  %v1117 = vrot.slane %v1108, %v1116
  %v1118 = vlaneseq
  %v1119 = vshrl.u32 %v1118, 7
  %v1120 = vsub.s32 2, %v1119
  %v1121 = vrot.slane %v1108, %v1120
  %v1122 = vlaneseq
  %v1123 = vshrl.u32 %v1122, 7
  %v1124 = vsub.s32 3, %v1123
  %v1125 = vrot.slane %v1108, %v1124
  %v1130 = vmul.f32 %v831, %v1113
  %v1131 = vmul.f32 %v832, %v1117
  %v1132 = vmul.f32 %v833, %v1121
  %v1133 = vmul.f32 %v834, %v1125
  %v1134 = vsub.f32 1.0, %v1108
  %v1136 = vlaneseq
  %v1137 = vshrl.u32 %v1136, 7
  %v1138 = vsub.s32 0, %v1137
  %v1139 = vrot.slane %v1134, %v1138
  %v1140 = vlaneseq
  %v1141 = vshrl.u32 %v1140, 7
  %v1142 = vsub.s32 1, %v1141
  %v1143 = vrot.slane %v1134, %v1142
  %v1144 = vlaneseq
  %v1145 = vshrl.u32 %v1144, 7
  %v1146 = vsub.s32 2, %v1145
  %v1147 = vrot.slane %v1134, %v1146
  %v1148 = vlaneseq
  %v1149 = vshrl.u32 %v1148, 7
  %v1150 = vsub.s32 3, %v1149
  %v1151 = vrot.slane %v1134, %v1150
  %v1156 = vadd.f32 %v1130, %v1139
  %v1157 = vadd.f32 %v1131, %v1143
  %v1158 = vadd.f32 %v1132, %v1147
  %v1159 = vadd.f32 %v1133, %v1151
  %1160 = vst [vmem:[#allocation3 + $0x80] sm:$0xff] %v1156
  %1161 = vst [vmem:[#allocation3 + $0x88] sm:$0xff] %v1157
  %1162 = vst [vmem:[#allocation3 + $0x90] sm:$0xff] %v1158
  %1163 = vst [vmem:[#allocation3 + $0x98] sm:$0xff] %v1159
  %1164 = vrot.lane.b32.xlu0 %v831, 127
  %v1165 = vpop.permute.xlu0 %1164
  %1166 = vrot.lane.b32.xlu0 %v832, 127
  %v1167 = vpop.permute.xlu0 %1166
  %1168 = vrot.lane.b32.xlu0 %v833, 127
  %v1169 = vpop.permute.xlu0 %1168
  %1170 = vrot.lane.b32.xlu0 %v834, 127
  %v1171 = vpop.permute.xlu0 %1170
  %v1172 = vsel %vm292, %v1169, %v1171
  %v1173 = vsel %vm292, %v1167, %v1169
  %v1174 = vsel %vm292, %v1165, %v1167
  %v1175 = vsel %vm292, %v1171, %v1165
  %v1176 = vld [vmem:[%s297] ss:$8 sm:$0xf]
  %v1178 = vlaneseq
  %v1179 = vshrl.u32 %v1178, 7
  %v1180 = vsub.s32 0, %v1179
  %v1181 = vrot.slane %v1176, %v1180
  %v1182 = vlaneseq
  %v1183 = vshrl.u32 %v1182, 7
  %v1184 = vsub.s32 1, %v1183
  %v1185 = vrot.slane %v1176, %v1184
  %v1186 = vlaneseq
  %v1187 = vshrl.u32 %v1186, 7
  %v1188 = vsub.s32 2, %v1187
  %v1189 = vrot.slane %v1176, %v1188
  %v1190 = vlaneseq
  %v1191 = vshrl.u32 %v1190, 7
  %v1192 = vsub.s32 3, %v1191
  %v1193 = vrot.slane %v1176, %v1192
  %v1198 = vmul.f32 %v1174, %v1181
  %v1199 = vmul.f32 %v1173, %v1185
  %v1200 = vmul.f32 %v1172, %v1189
  %v1201 = vmul.f32 %v1175, %v1193
  %v1202 = vsub.f32 1.0, %v1176
  %v1204 = vlaneseq
  %v1205 = vshrl.u32 %v1204, 7
  %v1206 = vsub.s32 0, %v1205
  %v1207 = vrot.slane %v1202, %v1206
  %v1208 = vlaneseq
  %v1209 = vshrl.u32 %v1208, 7
  %v1210 = vsub.s32 1, %v1209
  %v1211 = vrot.slane %v1202, %v1210
  %v1212 = vlaneseq
  %v1213 = vshrl.u32 %v1212, 7
  %v1214 = vsub.s32 2, %v1213
  %v1215 = vrot.slane %v1202, %v1214
  %v1216 = vlaneseq
  %v1217 = vshrl.u32 %v1216, 7
  %v1218 = vsub.s32 3, %v1217
  %v1219 = vrot.slane %v1202, %v1218
  %v1224 = vadd.f32 %v1198, %v1207
  %v1225 = vadd.f32 %v1199, %v1211
  %v1226 = vadd.f32 %v1200, %v1215
  %v1227 = vadd.f32 %v1201, %v1219
  %1228 = vst [vmem:[#allocation3 + $0xa0] sm:$0xff] %v1224
  %1229 = vst [vmem:[#allocation3 + $0xa8] sm:$0xff] %v1225
  %1230 = vst [vmem:[#allocation3 + $0xb0] sm:$0xff] %v1226
  %1231 = vst [vmem:[#allocation3 + $0xb8] sm:$0xff] %v1227
  %1232 = vrot.lane.b32.xlu0 %v831, 113
  %v1233 = vpop.permute.xlu0 %1232
  %1234 = vrot.lane.b32.xlu0 %v832, 113
  %v1235 = vpop.permute.xlu0 %1234
  %1236 = vrot.lane.b32.xlu0 %v833, 113
  %v1237 = vpop.permute.xlu0 %1236
  %1238 = vrot.lane.b32.xlu0 %v834, 113
  %v1239 = vpop.permute.xlu0 %1238
  %v1240 = vsel %vm348, %v1237, %v1239
  %v1241 = vsel %vm348, %v1235, %v1237
  %v1242 = vsel %vm348, %v1233, %v1235
  %v1243 = vsel %vm348, %v1239, %v1233
  %v1244 = vld [vmem:[%s353] ss:$8 sm:$0xf]
  %v1246 = vlaneseq
  %v1247 = vshrl.u32 %v1246, 7
  %v1248 = vsub.s32 0, %v1247
  %v1249 = vrot.slane %v1244, %v1248
  %v1250 = vlaneseq
  %v1251 = vshrl.u32 %v1250, 7
  %v1252 = vsub.s32 1, %v1251
  %v1253 = vrot.slane %v1244, %v1252
  %v1254 = vlaneseq
  %v1255 = vshrl.u32 %v1254, 7
  %v1256 = vsub.s32 2, %v1255
  %v1257 = vrot.slane %v1244, %v1256
  %v1258 = vlaneseq
  %v1259 = vshrl.u32 %v1258, 7
  %v1260 = vsub.s32 3, %v1259
  %v1261 = vrot.slane %v1244, %v1260
  %v1266 = vmul.f32 %v1242, %v1249
  %v1267 = vmul.f32 %v1241, %v1253
  %v1268 = vmul.f32 %v1240, %v1257
  %v1269 = vmul.f32 %v1243, %v1261
  %v1270 = vsub.f32 1.0, %v1244
  %v1272 = vlaneseq
  %v1273 = vshrl.u32 %v1272, 7
  %v1274 = vsub.s32 0, %v1273
  %v1275 = vrot.slane %v1270, %v1274
  %v1276 = vlaneseq
  %v1277 = vshrl.u32 %v1276, 7
  %v1278 = vsub.s32 1, %v1277
  %v1279 = vrot.slane %v1270, %v1278
  %v1280 = vlaneseq
  %v1281 = vshrl.u32 %v1280, 7
  %v1282 = vsub.s32 2, %v1281
  %v1283 = vrot.slane %v1270, %v1282
  %v1284 = vlaneseq
  %v1285 = vshrl.u32 %v1284, 7
  %v1286 = vsub.s32 3, %v1285
  %v1287 = vrot.slane %v1270, %v1286
  %v1292 = vadd.f32 %v1266, %v1275
  %v1293 = vadd.f32 %v1267, %v1279
  %v1294 = vadd.f32 %v1268, %v1283
  %v1295 = vadd.f32 %v1269, %v1287
  %1296 = vst [vmem:[#allocation3 + $0xc0] sm:$0xff] %v1292
  %1297 = vst [vmem:[#allocation3 + $0xc8] sm:$0xff] %v1293
  %1298 = vst [vmem:[#allocation3 + $0xd0] sm:$0xff] %v1294
  %1299 = vst [vmem:[#allocation3 + $0xd8] sm:$0xff] %v1295
  %1300 = vrot.lane.b32.xlu0 %v831, 112
  %v1301 = vpop.permute.xlu0 %1300
  %1302 = vrot.lane.b32.xlu0 %v832, 112
  %v1303 = vpop.permute.xlu0 %1302
  %1304 = vrot.lane.b32.xlu0 %v833, 112
  %v1305 = vpop.permute.xlu0 %1304
  %1306 = vrot.lane.b32.xlu0 %v834, 112
  %v1307 = vpop.permute.xlu0 %1306
  %v1308 = vsel %vm404, %v1305, %v1307
  %v1309 = vsel %vm404, %v1303, %v1305
  %v1310 = vsel %vm404, %v1301, %v1303
  %v1311 = vsel %vm404, %v1307, %v1301
  %v1312 = vld [vmem:[%s409] ss:$8 sm:$0xf]
  %v1314 = vlaneseq
  %v1315 = vshrl.u32 %v1314, 7
  %v1316 = vsub.s32 0, %v1315
  %v1317 = vrot.slane %v1312, %v1316
  %v1318 = vlaneseq
  %v1319 = vshrl.u32 %v1318, 7
  %v1320 = vsub.s32 1, %v1319
  %v1321 = vrot.slane %v1312, %v1320
  %v1322 = vlaneseq
  %v1323 = vshrl.u32 %v1322, 7
  %v1324 = vsub.s32 2, %v1323
  %v1325 = vrot.slane %v1312, %v1324
  %v1326 = vlaneseq
  %v1327 = vshrl.u32 %v1326, 7
  %v1328 = vsub.s32 3, %v1327
  %v1329 = vrot.slane %v1312, %v1328
  %v1334 = vmul.f32 %v1310, %v1317
  %v1335 = vmul.f32 %v1309, %v1321
  %v1336 = vmul.f32 %v1308, %v1325
  %v1337 = vmul.f32 %v1311, %v1329
  %v1338 = vsub.f32 1.0, %v1312
  %v1340 = vlaneseq
  %v1341 = vshrl.u32 %v1340, 7
  %v1342 = vsub.s32 0, %v1341
  %v1343 = vrot.slane %v1338, %v1342
  %v1344 = vlaneseq
  %v1345 = vshrl.u32 %v1344, 7
  %v1346 = vsub.s32 1, %v1345
  %v1347 = vrot.slane %v1338, %v1346
  %v1348 = vlaneseq
  %v1349 = vshrl.u32 %v1348, 7
  %v1350 = vsub.s32 2, %v1349
  %v1351 = vrot.slane %v1338, %v1350
  %v1352 = vlaneseq
  %v1353 = vshrl.u32 %v1352, 7
  %v1354 = vsub.s32 3, %v1353
  %v1355 = vrot.slane %v1338, %v1354
  %v1360 = vadd.f32 %v1334, %v1343
  %v1361 = vadd.f32 %v1335, %v1347
  %v1362 = vadd.f32 %v1336, %v1351
  %v1363 = vadd.f32 %v1337, %v1355
  %1364 = vst [vmem:[#allocation3 + $0xe0] sm:$0xff] %v1360
  %1365 = vst [vmem:[#allocation3 + $0xe8] sm:$0xff] %v1361
  %1366 = vst [vmem:[#allocation3 + $0xf0] sm:$0xff] %v1362
  %1367 = vst [vmem:[#allocation3 + $0xf8] sm:$0xff] %v1363
  %1368 = vrot.lane.b32.xlu0 %v831, 111
  %v1369 = vpop.permute.xlu0 %1368
  %1370 = vrot.lane.b32.xlu0 %v832, 111
  %v1371 = vpop.permute.xlu0 %1370
  %1372 = vrot.lane.b32.xlu0 %v833, 111
  %v1373 = vpop.permute.xlu0 %1372
  %1374 = vrot.lane.b32.xlu0 %v834, 111
  %v1375 = vpop.permute.xlu0 %1374
  %v1376 = vsel %vm460, %v1373, %v1375
  %v1377 = vsel %vm460, %v1371, %v1373
  %v1378 = vsel %vm460, %v1369, %v1371
  %v1379 = vsel %vm460, %v1375, %v1369
  %v1380 = vld [vmem:[%s465] ss:$8 sm:$0xf]
  %v1382 = vlaneseq
  %v1383 = vshrl.u32 %v1382, 7
  %v1384 = vsub.s32 0, %v1383
  %v1385 = vrot.slane %v1380, %v1384
  %v1386 = vlaneseq
  %v1387 = vshrl.u32 %v1386, 7
  %v1388 = vsub.s32 1, %v1387
  %v1389 = vrot.slane %v1380, %v1388
  %v1390 = vlaneseq
  %v1391 = vshrl.u32 %v1390, 7
  %v1392 = vsub.s32 2, %v1391
  %v1393 = vrot.slane %v1380, %v1392
  %v1394 = vlaneseq
  %v1395 = vshrl.u32 %v1394, 7
  %v1396 = vsub.s32 3, %v1395
  %v1397 = vrot.slane %v1380, %v1396
  %v1402 = vmul.f32 %v1378, %v1385
  %v1403 = vmul.f32 %v1377, %v1389
  %v1404 = vmul.f32 %v1376, %v1393
  %v1405 = vmul.f32 %v1379, %v1397
  %v1406 = vsub.f32 1.0, %v1380
  %v1408 = vlaneseq
  %v1409 = vshrl.u32 %v1408, 7
  %v1410 = vsub.s32 0, %v1409
  %v1411 = vrot.slane %v1406, %v1410
  %v1412 = vlaneseq
  %v1413 = vshrl.u32 %v1412, 7
  %v1414 = vsub.s32 1, %v1413
  %v1415 = vrot.slane %v1406, %v1414
  %v1416 = vlaneseq
  %v1417 = vshrl.u32 %v1416, 7
  %v1418 = vsub.s32 2, %v1417
  %v1419 = vrot.slane %v1406, %v1418
  %v1420 = vlaneseq
  %v1421 = vshrl.u32 %v1420, 7
  %v1422 = vsub.s32 3, %v1421
  %v1423 = vrot.slane %v1406, %v1422
  %v1428 = vadd.f32 %v1402, %v1411
  %v1429 = vadd.f32 %v1403, %v1415
  %v1430 = vadd.f32 %v1404, %v1419
  %v1431 = vadd.f32 %v1405, %v1423
  %1432 = vst [vmem:[#allocation3 + $0x100] sm:$0xff] %v1428
  %1433 = vst [vmem:[#allocation3 + $0x108] sm:$0xff] %v1429
  %1434 = vst [vmem:[#allocation3 + $0x110] sm:$0xff] %v1430
  %1435 = vst [vmem:[#allocation3 + $0x118] sm:$0xff] %v1431
  %v1436 = vld [vmem:[%s5] sm:$0xf]
  %v1437 = vld [vmem:[#allocation3] sm:$0xff]
  %v1438 = vld [vmem:[#allocation3 + $0x8] sm:$0xff]
  %v1439 = vld [vmem:[#allocation3 + $0x10] sm:$0xff]
  %v1440 = vld [vmem:[#allocation3 + $0x18] sm:$0xff]
  %v1441 = vld [vmem:[#allocation3 + $0x20] sm:$0xff]
  %v1442 = vld [vmem:[#allocation3 + $0x28] sm:$0xff]
  %v1443 = vld [vmem:[#allocation3 + $0x30] sm:$0xff]
  %v1444 = vld [vmem:[#allocation3 + $0x38] sm:$0xff]
  %v1445 = vld [vmem:[#allocation3 + $0x40] sm:$0xff]
  %v1446 = vld [vmem:[#allocation3 + $0x48] sm:$0xff]
  %v1447 = vld [vmem:[#allocation3 + $0x50] sm:$0xff]
  %v1448 = vld [vmem:[#allocation3 + $0x58] sm:$0xff]
  %v1449 = vld [vmem:[#allocation3 + $0x60] sm:$0xff]
  %v1450 = vld [vmem:[#allocation3 + $0x68] sm:$0xff]
  %v1451 = vld [vmem:[#allocation3 + $0x70] sm:$0xff]
  %v1452 = vld [vmem:[#allocation3 + $0x78] sm:$0xff]
  %v1453 = vld [vmem:[#allocation3 + $0x80] sm:$0xff]
  %v1454 = vld [vmem:[#allocation3 + $0x88] sm:$0xff]
  %v1455 = vld [vmem:[#allocation3 + $0x90] sm:$0xff]
  %v1456 = vld [vmem:[#allocation3 + $0x98] sm:$0xff]
  %v1457 = vld [vmem:[#allocation3 + $0xa0] sm:$0xff]
  %v1458 = vld [vmem:[#allocation3 + $0xa8] sm:$0xff]
  %v1459 = vld [vmem:[#allocation3 + $0xb0] sm:$0xff]
  %v1460 = vld [vmem:[#allocation3 + $0xb8] sm:$0xff]
  %v1461 = vld [vmem:[#allocation3 + $0xc0] sm:$0xff]
  %v1462 = vld [vmem:[#allocation3 + $0xc8] sm:$0xff]
  %v1463 = vld [vmem:[#allocation3 + $0xd0] sm:$0xff]
  %v1464 = vld [vmem:[#allocation3 + $0xd8] sm:$0xff]
  %v1465 = vld [vmem:[#allocation3 + $0xe0] sm:$0xff]
  %v1466 = vld [vmem:[#allocation3 + $0xe8] sm:$0xff]
  %v1467 = vld [vmem:[#allocation3 + $0xf0] sm:$0xff]
  %v1468 = vld [vmem:[#allocation3 + $0xf8] sm:$0xff]
  %v1469 = vld [vmem:[#allocation3 + $0x100] sm:$0xff]
  %v1470 = vld [vmem:[#allocation3 + $0x108] sm:$0xff]
  %v1471 = vld [vmem:[#allocation3 + $0x110] sm:$0xff]
  %v1472 = vld [vmem:[#allocation3 + $0x118] sm:$0xff]
  %v1473 = vld [vmem:[%s6] sm:$0xf]
  %1475 = vset.pattern.permute.xlu0 0
  %1476 = vperm.xlu0 %1475, %v1473
  %v1477 = vpop.permute.xlu0 %1476
  %vm1479 = vcmask 588800
  %v1481 = vsel %vm1479, %v1436, 0
  %1483 = vmatprep.subr.mxu0 %v1438
  %1484 = vmatpush1.msra.mxu0 %v1437
  %1485 = vmatprep.subr.mxu0 %v1442
  %1486 = vmatpush1.msra.mxu0 %v1441
  %1487 = vmatprep.subr.mxu0 %v1446
  %1488 = vmatpush1.msra.mxu0 %v1445
  %1489 = vmatprep.subr.mxu0 %v1450
  %1490 = vmatpush1.msra.mxu0 %v1449
  %1491 = vmatprep.subr.mxu0 %v1454
  %1492 = vmatpush1.msra.mxu0 %v1453
  %1493 = vmatprep.subr.mxu0 %v1458
  %1494 = vmatpush1.msra.mxu0 %v1457
  %1495 = vmatprep.subr.mxu0 %v1462
  %1496 = vmatpush1.msra.mxu0 %v1461
  %1497 = vmatprep.subr.mxu0 %v1466
  %1498 = vmatpush1.msra.mxu0 %v1465
  %1499 = vmatprep.subr.mxu0 %v1470
  %1500 = vmatpush1.msra.mxu0 %v1469
  %1501 = vmatprep.subr.mxu0 0.0
  %1502 = vmatpush1.msra.mxu0 0.0
  %1503 = vmatprep.subr.mxu0 0.0
  %1504 = vmatpush1.msra.mxu0 0.0
  %1505 = vmatprep.subr.mxu0 0.0
  %1506 = vmatpush1.msra.mxu0 0.0
  %1507 = vmatprep.subr.mxu0 0.0
  %1508 = vmatpush1.msra.mxu0 0.0
  %1509 = vmatprep.subr.mxu0 0.0
  %1510 = vmatpush1.msra.mxu0 0.0
  %1511 = vmatprep.subr.mxu0 0.0
  %1512 = vmatpush1.msra.mxu0 0.0
  %1513 = vmatprep.subr.mxu0 0.0
  %1514 = vmatpush1.msra.mxu0 0.0
  %1515 = vmatprep.subr.mxu0 0.0
  %1516 = vmatpush1.msra.mxu0 0.0
  %1517 = vmatprep.subr.mxu0 0.0
  %1518 = vmatpush1.msra.mxu0 0.0
  %1519 = vmatprep.subr.mxu0 0.0
  %1520 = vmatpush1.msra.mxu0 0.0
  %1521 = vmatprep.subr.mxu0 0.0
  %1522 = vmatpush1.msra.mxu0 0.0
  %1523 = vmatprep.subr.mxu0 0.0
  %1524 = vmatpush1.msra.mxu0 0.0
  %1525 = vmatprep.subr.mxu0 0.0
  %1526 = vmatpush1.msra.mxu0 0.0
  %1527 = vmatprep.subr.mxu0 0.0
  %1528 = vmatpush1.msra.mxu0 0.0
  %1529 = vmatprep.subr.mxu0 0.0
  %1530 = vmatpush1.msra.mxu0 0.0
  %1531 = vmatprep.subr.mxu0 0.0
  %1532 = vmatpush1.msra.mxu0 0.0
  %1533 = vmatprep.subr.mxu0 0.0
  %1534 = vmatpush1.msra.mxu0 0.0
  %1535 = vmatprep.subr.mxu0 0.0
  %1536 = vmatpush1.msra.mxu0 0.0
  %1537 = vmatprep.subr.mxu0 0.0
  %1538 = vmatpush1.msra.mxu0 0.0
  %1539 = vmatprep.subr.mxu0 0.0
  %1540 = vmatpush1.msra.mxu0 0.0
  %1541 = vmatprep.subr.mxu0 0.0
  %1542 = vmatpush1.msra.mxu0 0.0
  %1543 = vmatprep.subr.mxu0 0.0
  %1544 = vmatpush1.msra.mxu0 0.0
  %1545 = vmatprep.subr.mxu0 0.0
  %1546 = vmatpush1.msra.mxu0 0.0
  %1547 = vmatprep.mubr.f32.mxu0 0.0
  %1548 = vmatmul.mubr.f32.gmra.mrb[0].mxu0 %v1481
  %v1549 = vpop.f32.mrb[0].mxu0
  %v1550 = vadd.f32 %v1477, %v1549
  %v1551 = vpop.f32.mrb[0].mxu0
  %v1552 = vadd.f32 %v1477, %v1551
  %1553 = vdwg.mxu0
  %1554 = vmatprep.subr.mxu0 %v1440
  %1555 = vmatpush1.msra.mxu0 %v1439
  %1556 = vmatprep.subr.mxu0 %v1444
  %1557 = vmatpush1.msra.mxu0 %v1443
  %1558 = vmatprep.subr.mxu0 %v1448
  %1559 = vmatpush1.msra.mxu0 %v1447
  %1560 = vmatprep.subr.mxu0 %v1452
  %1561 = vmatpush1.msra.mxu0 %v1451
  %1562 = vmatprep.subr.mxu0 %v1456
  %1563 = vmatpush1.msra.mxu0 %v1455
  %1564 = vmatprep.subr.mxu0 %v1460
  %1565 = vmatpush1.msra.mxu0 %v1459
  %1566 = vmatprep.subr.mxu0 %v1464
  %1567 = vmatpush1.msra.mxu0 %v1463
  %1568 = vmatprep.subr.mxu0 %v1468
  %1569 = vmatpush1.msra.mxu0 %v1467
  %1570 = vmatprep.subr.mxu0 %v1472
  %1571 = vmatpush1.msra.mxu0 %v1471
  %1572 = vmatprep.subr.mxu0 0.0
  %1573 = vmatpush1.msra.mxu0 0.0
  %1574 = vmatprep.subr.mxu0 0.0
  %1575 = vmatpush1.msra.mxu0 0.0
  %1576 = vmatprep.subr.mxu0 0.0
  %1577 = vmatpush1.msra.mxu0 0.0
  %1578 = vmatprep.subr.mxu0 0.0
  %1579 = vmatpush1.msra.mxu0 0.0
  %1580 = vmatprep.subr.mxu0 0.0
  %1581 = vmatpush1.msra.mxu0 0.0
  %1582 = vmatprep.subr.mxu0 0.0
  %1583 = vmatpush1.msra.mxu0 0.0
  %1584 = vmatprep.subr.mxu0 0.0
  %1585 = vmatpush1.msra.mxu0 0.0
  %1586 = vmatprep.subr.mxu0 0.0
  %1587 = vmatpush1.msra.mxu0 0.0
  %1588 = vmatprep.subr.mxu0 0.0
  %1589 = vmatpush1.msra.mxu0 0.0
  %1590 = vmatprep.subr.mxu0 0.0
  %1591 = vmatpush1.msra.mxu0 0.0
  %1592 = vmatprep.subr.mxu0 0.0
  %1593 = vmatpush1.msra.mxu0 0.0
  %1594 = vmatprep.subr.mxu0 0.0
  %1595 = vmatpush1.msra.mxu0 0.0
  %1596 = vmatprep.subr.mxu0 0.0
  %1597 = vmatpush1.msra.mxu0 0.0
  %1598 = vmatprep.subr.mxu0 0.0
  %1599 = vmatpush1.msra.mxu0 0.0
  %1600 = vmatprep.subr.mxu0 0.0
  %1601 = vmatpush1.msra.mxu0 0.0
  %1602 = vmatprep.subr.mxu0 0.0
  %1603 = vmatpush1.msra.mxu0 0.0
  %1604 = vmatprep.subr.mxu0 0.0
  %1605 = vmatpush1.msra.mxu0 0.0
  %1606 = vmatprep.subr.mxu0 0.0
  %1607 = vmatpush1.msra.mxu0 0.0
  %1608 = vmatprep.subr.mxu0 0.0
  %1609 = vmatpush1.msra.mxu0 0.0
  %1610 = vmatprep.subr.mxu0 0.0
  %1611 = vmatpush1.msra.mxu0 0.0
  %1612 = vmatprep.subr.mxu0 0.0
  %1613 = vmatpush1.msra.mxu0 0.0
  %1614 = vmatprep.subr.mxu0 0.0
  %1615 = vmatpush1.msra.mxu0 0.0
  %1616 = vmatprep.subr.mxu0 0.0
  %1617 = vmatpush1.msra.mxu0 0.0
  %1618 = vmatprep.mubr.f32.mxu0 0.0
  %1619 = vmatmul.mubr.f32.gmra.mrb[0].mxu0 %v1481
  %v1620 = vpop.f32.mrb[0].mxu0
  %v1621 = vadd.f32 %v1477, %v1620
  %v1622 = vpop.f32.mrb[0].mxu0
  %v1623 = vadd.f32 %v1477, %v1622
  %1624 = vdwg.mxu0
  %v1625 = vld [vmem:[%s7] sm:$0xf]
  %v1626 = vmul.f32 %v1625, 3.0
  %v1627 = vmul.f32 %v1626, 1.442695
  %v1628 = vpow.pop %v1627
  %1630 = vset.pattern.permute.xlu0 0
  %1631 = vperm.xlu0 %1630, %v1628
  %v1632 = vpop.permute.xlu0 %1631
  %v1634 = vmul.f32 %v1550, %v1632
  %v1635 = vmul.f32 %v1552, %v1632
  %v1636 = vmul.f32 %v1621, %v1632
  %v1637 = vmul.f32 %v1623, %v1632
  %v1638 = vadd.f32 %v1634, 2.0
  %v1639 = vadd.f32 %v1635, 2.0
  %v1640 = vadd.f32 %v1636, 2.0
  %v1641 = vadd.f32 %v1637, 2.0
  %v1642 = vxor.u32 %v1638, 2147483648
  %v1643 = vxor.u32 %v1639, 2147483648
  %v1644 = vxor.u32 %v1640, 2147483648
  %v1645 = vxor.u32 %v1641, 2147483648
  %v1646 = vmul.f32 %v1642, 1.442695
  %v1647 = vpow.pop %v1646
  %v1648 = vmul.f32 %v1643, 1.442695
  %v1649 = vpow.pop %v1648
  %v1650 = vmul.f32 %v1644, 1.442695
  %v1651 = vpow.pop %v1650
  %v1652 = vmul.f32 %v1645, 1.442695
  %v1653 = vpow.pop %v1652
  %v1654 = vadd.f32 %v1647, 1.0
  %v1655 = vadd.f32 %v1649, 1.0
  %v1656 = vadd.f32 %v1651, 1.0
  %v1657 = vadd.f32 %v1653, 1.0
  %v1658 = vrcp.pop %v1654
  %v1659 = vmul.f32 1.0, %v1658
  %v1660 = vrcp.pop %v1655
  %v1661 = vmul.f32 1.0, %v1660
  %v1662 = vrcp.pop %v1656
  %v1663 = vmul.f32 1.0, %v1662
  %v1664 = vrcp.pop %v1657
  %v1665 = vmul.f32 1.0, %v1664
  %v1670 = vcombine.low %v1659, %v1661
  %v1671 = vcombine.low %v1663, %v1665
  %v1673 = vunpack.c.l.s4 1983009808
  %v1674 = vunpack.c.0.s8 %v1673
  %v1675 = vlaneseq
  %v1676 = vshrl.u32 %v1675, 7
  %v1677 = vsub.s32 %v1674, %v1676
  %v1678 = vrot.slane %v1670, %v1677
  %v1680 = vunpack.c.l.s4 1983009808
  %v1681 = vunpack.c.0.s8 %v1680
  %v1682 = vlaneseq
  %v1683 = vshrl.u32 %v1682, 7
  %v1684 = vsub.s32 %v1681, %v1683
  %v1685 = vrot.slane %v1671, %v1684
  %v1686 = vcombine.low %v1678, %v1685
  %v1688 = vmul.f32 %v44, %v1686
  %v1693 = vcombine.low %v1634, %v1635
  %v1694 = vcombine.low %v1636, %v1637
  %v1696 = vunpack.c.l.s4 1983009808
  %v1697 = vunpack.c.0.s8 %v1696
  %v1698 = vlaneseq
  %v1699 = vshrl.u32 %v1698, 7
  %v1700 = vsub.s32 %v1697, %v1699
  %v1701 = vrot.slane %v1693, %v1700
  %v1703 = vunpack.c.l.s4 1983009808
  %v1704 = vunpack.c.0.s8 %v1703
  %v1705 = vlaneseq
  %v1706 = vshrl.u32 %v1705, 7
  %v1707 = vsub.s32 %v1704, %v1706
  %v1708 = vrot.slane %v1694, %v1707
  %v1709 = vcombine.high %v1701, %v1708
  %v1711 = vadd.f32 %v1688, %v1709
  %1712 = vst [vmem:[%s41] sm:$0xff] %v1711
  %v1713 = vlog2.pop %v1659
  %v1714 = vmul.f32 %v1713, 0.6931472
  %v1715 = vlog2.pop %v1661
  %v1716 = vmul.f32 %v1715, 0.6931472
  %v1717 = vlog2.pop %v1663
  %v1718 = vmul.f32 %v1717, 0.6931472
  %v1719 = vlog2.pop %v1665
  %v1720 = vmul.f32 %v1719, 0.6931472
  %v1721 = vsel %vm519, %v1714, 0.0
  %v1722 = vrot.slane %v1721, 4
  %v1723 = vadd.f32 %v1721, %v1722
  %v1724 = vrot.slane %v1723, 2
  %v1725 = vadd.f32 %v1723, %v1724
  %v1726 = vrot.slane %v1725, 1
  %v1727 = vadd.f32 %v1725, %v1726
  %v1728 = vsel %vm519, %v1716, 0.0
  %v1729 = vrot.slane %v1728, 4
  %v1730 = vadd.f32 %v1728, %v1729
  %v1731 = vrot.slane %v1730, 2
  %v1732 = vadd.f32 %v1730, %v1731
  %v1733 = vrot.slane %v1732, 1
  %v1734 = vadd.f32 %v1732, %v1733
  %v1735 = vsel %vm519, %v1718, 0.0
  %v1736 = vrot.slane %v1735, 4
  %v1737 = vadd.f32 %v1735, %v1736
  %v1738 = vrot.slane %v1737, 2
  %v1739 = vadd.f32 %v1737, %v1738
  %v1740 = vrot.slane %v1739, 1
  %v1741 = vadd.f32 %v1739, %v1740
  %v1742 = vsel %vm519, %v1720, 0.0
  %v1743 = vrot.slane %v1742, 4
  %v1744 = vadd.f32 %v1742, %v1743
  %v1745 = vrot.slane %v1744, 2
  %v1746 = vadd.f32 %v1744, %v1745
  %v1747 = vrot.slane %v1746, 1
  %v1748 = vadd.f32 %v1746, %v1747
  %v1749 = vld [vmem:[%s9] sm:$0xff]
  %v1754 = vcombine.low %v1727, %v1734
  %v1755 = vcombine.low %v1741, %v1748
  %v1757 = vunpack.c.l.s4 1983009808
  %v1758 = vunpack.c.0.s8 %v1757
  %v1759 = vlaneseq
  %v1760 = vshrl.u32 %v1759, 7
  %v1761 = vsub.s32 %v1758, %v1760
  %v1762 = vrot.slane %v1754, %v1761
  %v1764 = vunpack.c.l.s4 1983009808
  %v1765 = vunpack.c.0.s8 %v1764
  %v1766 = vlaneseq
  %v1767 = vshrl.u32 %v1766, 7
  %v1768 = vsub.s32 %v1765, %v1767
  %v1769 = vrot.slane %v1755, %v1768
  %v1770 = vcombine.low %v1762, %v1769
  %v1772 = vmul.f32 %v1749, %v1770
  %v1774 = vcombine.high %v1772, %v1772
  %v1776 = vunpack.c.l.s4 1983009808
  %v1777 = vunpack.c.0.s8 %v1776
  %v1778 = vlaneseq
  %v1779 = vshrl.u32 %v1778, 7
  %v1780 = vsub.s32 %v1777, %v1779
  %v1781 = vrot.slane %v1772, %v1780
  %v1783 = vunpack.c.l.s4 1983009808
  %v1784 = vunpack.c.0.s8 %v1783
  %v1785 = vlaneseq
  %v1786 = vshrl.u32 %v1785, 7
  %v1787 = vsub.s32 %v1784, %v1786
  %v1788 = vrot.slane %v1774, %v1787
  %v1789 = vcombine.high %v1781, %v1781
  %v1790 = vcombine.high %v1788, %v1788
  %v1795 = vsel %vm519, %v1781, 0.0
  %v1796 = vsel %vm519, %v1789, 0.0
  %v1797 = vadd.f32 %v1795, %v1796
  %v1798 = vsel %vm519, %v1788, 0.0
  %v1799 = vadd.f32 %v1797, %v1798
  %v1800 = vsel %vm519, %v1790, 0.0
  %v1801 = vadd.f32 %v1799, %v1800
  %1802 = vadd.xlane.f32.xlu0 %v1801
  %v1803 = vpop.xlane.xlu0 %1802
  %v1804 = vld [vmem:[%s10] sm:$0x3]
  %v1805 = vadd.f32 %v1804, %v1803
  %vm1806 = vcmask 1024
  %1807 = vst.msk [vmem:[%s12] sm:$0x3] %vm1806, %v1805
  %s1808 = scalar_lea.vmem %s11, 8
  // Predicated region
  $region46: #{affine_coupling_forward.1} parent=0 // pred_check
    _
  $region47: #{affine_coupling_forward.1} parent=0 // pred_check_branch
    %1810 = sbr.rel (0) target = $region49
  $region48: #{affine_coupling_forward.1} parent=0 // pred_region
    _
  $region49: #{affine_coupling_forward.1} parent=0 // pred_fallthru
    _
  // Predicated region
  $region50: #{affine_coupling_forward.1} parent=0 // pred_check
    _
  $region51: #{affine_coupling_forward.1} parent=0 // pred_check_branch
    %1812 = sbr.rel (0) target = $region53
  $region52: #{affine_coupling_forward.1} parent=0 // pred_region
    _
  $region53: #{affine_coupling_forward.1} parent=0 // pred_fallthru
    _
  // Predicated region
  $region54: #{affine_coupling_forward.1} parent=0 // pred_check
    _
  $region55: #{affine_coupling_forward.1} parent=0 // pred_check_branch
    %1814 = sbr.rel (0) target = $region57
  $region56: #{affine_coupling_forward.1} parent=0 // pred_region
    %s1815 = scalar_lea.vmem %s11, 8
  $region57: #{affine_coupling_forward.1} parent=0 // pred_fallthru
    _
  // Predicated region
  $region58: #{affine_coupling_forward.1} parent=0 // pred_check
    _
  $region59: #{affine_coupling_forward.1} parent=0 // pred_check_branch
    %1817 = sbr.rel (0) target = $region61
  $region60: #{affine_coupling_forward.1} parent=0 // pred_region
    _
  $region61: #{affine_coupling_forward.1} parent=0 // pred_fallthru
    _

</llo_original>
